<compile_context>
chip_gen: v5e
topology: v5e:2x2
jax: 0.10.0
libtpu: 0.0.40
codegen_flags: <defaults>
</compile_context>

<pallas_src>
import functools

import jax
import jax.numpy as jnp
from jax.experimental import pallas as pl
from jax.experimental.pallas import tpu as pltpu

EPS = 1e-5  # torch.nn.LayerNorm default


def _layernorm(v, g, b):
    mu = jnp.mean(v, axis=-1, keepdims=True)
    var = jnp.mean((v - mu) ** 2, axis=-1, keepdims=True)
    return (v - mu) * jax.lax.rsqrt(var + EPS) * g + b


def _blocks_kernel(n_heads, n_blocks,
                   # inputs
                   x_ref, te_ref,
                   g_pre, b_pre, g_lnx, b_lnx,
                   wqkv, bqkv, wp, bp,
                   wa1x, wa1t, ba1, wa2, ba2,
                   wm0, bm0, wm1, bm1,
                   wb1x, wb1t, bb1, wb2, bb2,
                   # outputs
                   y_ref, kout_ref, vout_ref,
                   # scratch: activation carried across blocks (per batch elem)
                   carry_ref):
    blk = pl.program_id(1)

    @pl.when(blk == 0)
    def _():
        carry_ref[...] = x_ref[...]

    x = carry_ref[...]                         # (T, E) f32
    te = te_ref[...]                           # (T, Dt) f32
    te_b = te.astype(jnp.bfloat16)
    T, E = x.shape
    H = n_heads
    dh = E // H

    # pre_r_ln then ln_x (both LayerNorms, f32 statistics)
    h = _layernorm(x, g_pre[...], b_pre[...])
    hn = _layernorm(h, g_lnx[...], b_lnx[...])
    hn_b = hn.astype(jnp.bfloat16)

    # Fused QKV projection (one MXU launch, lane-dense 3E output), f32 accum.
    qkv = jnp.dot(hn_b, wqkv[...], preferred_element_type=jnp.float32) + bqkv[...]
    scale = 1.0 / (float(dh) ** 0.5)           # use_muP_factor = False
    q = qkv[:, :E] * scale                     # fold scale into Q (T*E work)
    k = qkv[:, E:2 * E]
    v = qkv[:, 2 * E:]

    # Head-batched attention: (H, T, dh) tensors, two batched dot_generals.
    qh = jnp.stack([q[:, hd * dh:(hd + 1) * dh] for hd in range(H)],
                   axis=0).astype(jnp.bfloat16)
    kh = jnp.stack([k[:, hd * dh:(hd + 1) * dh] for hd in range(H)],
                   axis=0).astype(jnp.bfloat16)
    vh = jnp.stack([v[:, hd * dh:(hd + 1) * dh] for hd in range(H)],
                   axis=0).astype(jnp.bfloat16)

    s = jax.lax.dot_general(qh, kh, (((2,), (2,)), ((0,), (0,))),
                            preferred_element_type=jnp.float32)    # (H, T, T)
    # clipped-causal mask with an empty KV cache and T <= maxlen == causal mask
    row = jax.lax.broadcasted_iota(jnp.int32, (H, T, T), 1)
    col = jax.lax.broadcasted_iota(jnp.int32, (H, T, T), 2)
    s = jnp.where(row >= col, s, -1e30)
    s = s - jnp.max(s, axis=-1, keepdims=True)
    p = jnp.exp(s)                                                 # f32
    inv_l = pl.reciprocal(jnp.sum(p, axis=-1, keepdims=True), approx=True)
    a = jax.lax.dot_general(p.astype(jnp.bfloat16), vh,
                            (((2,), (1,)), ((0,), (0,))),
                            preferred_element_type=jnp.float32)    # (H, T, dh)
    a = a * inv_l                              # normalize the small accumulator
    a_flat = jnp.concatenate([a[hd] for hd in range(H)], axis=-1)  # (T, E)

    aproj = (jnp.dot(a_flat.astype(jnp.bfloat16), wp[...],
                     preferred_element_type=jnp.float32) + bp[...])

    # MTAdapter on the attention output: aproj + W2 relu(W1 [aproj;te] + b1) + b2
    ap_b = aproj.astype(jnp.bfloat16)
    z = jnp.maximum(
        jnp.dot(ap_b, wa1x[...], preferred_element_type=jnp.float32)
        + jnp.dot(te_b, wa1t[...], preferred_element_type=jnp.float32)
        + ba1[...], 0.0)
    ad = (jnp.dot(z.astype(jnp.bfloat16), wa2[...],
                  preferred_element_type=jnp.float32) + ba2[...])
    attn_out = h + (aproj + ad)                # X_bte + adapter(R_bte, te)

    # pointwise MLP: mlp1(mlp0(x))  (mlp0 = Linear+ReLU, mlp1 = Linear)
    ao_b = attn_out.astype(jnp.bfloat16)
    m0 = jnp.maximum(
        jnp.dot(ao_b, wm0[...], preferred_element_type=jnp.float32) + bm0[...],
        0.0)
    m = (jnp.dot(m0.astype(jnp.bfloat16), wm1[...],
                 preferred_element_type=jnp.float32) + bm1[...])

    # MTAdapter on the MLP output
    m_b = m.astype(jnp.bfloat16)
    z2 = jnp.maximum(
        jnp.dot(m_b, wb1x[...], preferred_element_type=jnp.float32)
        + jnp.dot(te_b, wb1t[...], preferred_element_type=jnp.float32)
        + bb1[...], 0.0)
    ad2 = (jnp.dot(z2.astype(jnp.bfloat16), wb2[...],
                   preferred_element_type=jnp.float32) + bb2[...])
    y = attn_out + (m + ad2)                   # is_residual = True

    carry_ref[...] = y                         # feed the next block
    kout_ref[...] = k.astype(kout_ref.dtype)   # new KV-cache content (bf16)
    vout_ref[...] = v.astype(vout_ref.dtype)

    @pl.when(blk == n_blocks - 1)
    def _():
        y_ref[...] = carry_ref[...]            # final stack output (f32)


PARAM_ORDER = [
    "g_pre", "b_pre", "g_lnx", "b_lnx",
    "wqkv", "bqkv", "wp", "bp",
    "wa1x", "wa1t", "ba1", "wa2", "ba2",
    "wm0", "bm0", "wm1", "bm1",
    "wb1x", "wb1t", "bb1", "wb2", "bb2",
]


def run_blocks(x, te, stacked_params, n_heads):
    """Run all blocks in one pallas_call. Returns (y, K_all, V_all)."""
    B, T, E = x.shape
    Dt = te.shape[-1]
    weights = [stacked_params[name] for name in PARAM_ORDER]
    n_blocks = weights[0].shape[0]

    def w_spec(w):
        nd = w.ndim
        # leading (block) dim squeezed; constant tile per block, pipelined so
        # the next block's weights are prefetched during the current compute.
        return pl.BlockSpec((None,) + w.shape[1:],
                            lambda b, blk, _n=nd: (blk,) + (0,) * (_n - 1))

    in_specs = ([pl.BlockSpec((None, T, E), lambda b, blk: (b, 0, 0)),
                 pl.BlockSpec((None, T, Dt), lambda b, blk: (b, 0, 0))]
                + [w_spec(w) for w in weights])
    out_specs = [
        pl.BlockSpec((None, T, E), lambda b, blk: (b, 0, 0)),
        pl.BlockSpec((None, None, T, E), lambda b, blk: (blk, b, 0, 0)),
        pl.BlockSpec((None, None, T, E), lambda b, blk: (blk, b, 0, 0)),
    ]
    out_shape = [
        jax.ShapeDtypeStruct((B, T, E), jnp.float32),
        jax.ShapeDtypeStruct((n_blocks, B, T, E), jnp.bfloat16),
        jax.ShapeDtypeStruct((n_blocks, B, T, E), jnp.bfloat16),
    ]

    kernel = functools.partial(_blocks_kernel, n_heads, n_blocks)
    y, k_all, v_all = pl.pallas_call(
        kernel,
        grid=(B, n_blocks),
        in_specs=in_specs,
        out_specs=out_specs,
        out_shape=out_shape,
        scratch_shapes=[pltpu.VMEM((T, E), jnp.float32)],
        compiler_params=pltpu.CompilerParams(
            dimension_semantics=("parallel", "arbitrary")),
    )(x, te, *weights)
    return y, k_all, v_all


def init_block_params(key, E, Dt, z_dim, mlp_hidden):
    ks = jax.random.split(key, 12)
    wn = lambda k, shp, s=0.02: (s * jax.random.normal(k, shp)).astype(jnp.bfloat16)
    zf = lambda shp: jnp.zeros(shp, jnp.float32)
    on = lambda shp: jnp.ones(shp, jnp.float32)
    return {
        # LayerNorms (gamma/beta), f32, kept (1, E) for clean broadcasting
        "g_pre": on((1, E)), "b_pre": zf((1, E)),
        "g_lnx": on((1, E)), "b_lnx": zf((1, E)),
        # fused q/k/v projection + output projection (bf16 weights, f32 bias)
        "wqkv": wn(ks[0], (E, 3 * E)), "bqkv": zf((1, 3 * E)),
        "wp": wn(ks[1], (E, E)), "bp": zf((1, E)),
        # attention-side MTAdapter: cat([x, t]) @ W1 split as x@W1x + t@W1t
        "wa1x": wn(ks[2], (E, z_dim)), "wa1t": wn(ks[3], (Dt, z_dim)),
        "ba1": zf((1, z_dim)),
        "wa2": wn(ks[4], (z_dim, E)), "ba2": zf((1, E)),
        # pointwise MLP (mlp0: Linear+ReLU, mlp1: Linear)
        "wm0": wn(ks[5], (E, mlp_hidden)), "bm0": zf((1, mlp_hidden)),
        "wm1": wn(ks[6], (mlp_hidden, E)), "bm1": zf((1, E)),
        # MLP-side MTAdapter
        "wb1x": wn(ks[7], (E, z_dim)), "wb1t": wn(ks[8], (Dt, z_dim)),
        "bb1": zf((1, z_dim)),
        "wb2": wn(ks[9], (z_dim, E)), "bb2": zf((1, E)),
    }


def stack_block_params(block_params):
    """Stack per-block param dicts along a new leading n_blocks axis."""
    return {name: jnp.stack([bp[name] for bp in block_params], axis=0)
            for name in PARAM_ORDER}


def mt_adapter_residual_recurrent_blocks(x, first, state, task_embed,
                                         stacked_params, n_heads, maxlen):
    # `first` only affects the clipped-causal mask via episode resets, which
    # (with an empty KV cache) reduces to the causal mask built in-kernel.
    n_blocks = stacked_params[PARAM_ORDER[0]].shape[0]
    assert len(state) == n_blocks, (
        f"Length of state {len(state)} did not match length of blocks "
        f"{n_blocks}")
    y, k_all, v_all = run_blocks(x, task_embed, stacked_params, n_heads)
    # new xf_state = last `maxlen` K / V entries (T <= maxlen here)
    state_out = [(k_all[i][:, -maxlen:], v_all[i][:, -maxlen:])
                 for i in range(n_blocks)]
    return y, state_out


if __name__ == "__main__":
    # small shapes consistent with the module
    B, T, E = 2, 8, 32
    n_heads = 4
    Dt = 16                      # task_embed_dim
    adapter_dim_factor = 4
    z_dim = E // adapter_dim_factor
    mlp_hidden = 2 * E           # pointwise_ratio = 2
    maxlen = 64
    n_blocks = 2

    key = jax.random.PRNGKey(0)
    kx, kt, *kblocks = jax.random.split(key, 2 + n_blocks)

    x = jax.random.normal(kx, (B, T, E), dtype=jnp.float32)
    task_embed = jax.random.normal(kt, (B, T, Dt), dtype=jnp.float32)
    first = jnp.zeros((B, T), dtype=jnp.bool_).at[:, 0].set(True)
    # per-block initial state: empty KV cache (initial_T = 0), cache dtype bf16
    state = [(jnp.zeros((B, 0, E), jnp.bfloat16),
              jnp.zeros((B, 0, E), jnp.bfloat16)) for _ in range(n_blocks)]

    block_params = [init_block_params(kblocks[i], E, Dt, z_dim, mlp_hidden)
                    for i in range(n_blocks)]
    stacked = stack_block_params(block_params)

    y, state_out = mt_adapter_residual_recurrent_blocks(
        x, first, state, task_embed, stacked, n_heads, maxlen)

    y = jax.block_until_ready(y)
    for k_s, v_s in state_out:
        jax.block_until_ready(k_s)
        jax.block_until_ready(v_s)

    assert y.shape == (B, T, E) and y.dtype == jnp.float32
    assert len(state_out) == n_blocks
    assert state_out[0][0].shape == (B, T, E)
    print("KERNEL_OK")
</pallas_src>

<mosaic_0001>
module attributes {stable_mosaic.version = 11 : i64} {
  func.func @_blocks_kernel(%arg0: i32, %arg1: i32, %arg2: memref<1x8x32xf32, #tpu.memory_space<vmem>>, %arg3: memref<1x8x16xf32, #tpu.memory_space<vmem>>, %arg4: memref<1x1x32xf32, #tpu.memory_space<vmem>>, %arg5: memref<1x1x32xf32, #tpu.memory_space<vmem>>, %arg6: memref<1x1x32xf32, #tpu.memory_space<vmem>>, %arg7: memref<1x1x32xf32, #tpu.memory_space<vmem>>, %arg8: memref<1x32x96xbf16, #tpu.memory_space<vmem>>, %arg9: memref<1x1x96xf32, #tpu.memory_space<vmem>>, %arg10: memref<1x32x32xbf16, #tpu.memory_space<vmem>>, %arg11: memref<1x1x32xf32, #tpu.memory_space<vmem>>, %arg12: memref<1x32x8xbf16, #tpu.memory_space<vmem>>, %arg13: memref<1x16x8xbf16, #tpu.memory_space<vmem>>, %arg14: memref<1x1x8xf32, #tpu.memory_space<vmem>>, %arg15: memref<1x8x32xbf16, #tpu.memory_space<vmem>>, %arg16: memref<1x1x32xf32, #tpu.memory_space<vmem>>, %arg17: memref<1x32x64xbf16, #tpu.memory_space<vmem>>, %arg18: memref<1x1x64xf32, #tpu.memory_space<vmem>>, %arg19: memref<1x64x32xbf16, #tpu.memory_space<vmem>>, %arg20: memref<1x1x32xf32, #tpu.memory_space<vmem>>, %arg21: memref<1x32x8xbf16, #tpu.memory_space<vmem>>, %arg22: memref<1x16x8xbf16, #tpu.memory_space<vmem>>, %arg23: memref<1x1x8xf32, #tpu.memory_space<vmem>>, %arg24: memref<1x8x32xbf16, #tpu.memory_space<vmem>>, %arg25: memref<1x1x32xf32, #tpu.memory_space<vmem>>, %arg26: memref<1x8x32xf32, #tpu.memory_space<vmem>>, %arg27: memref<1x1x8x32xbf16, #tpu.memory_space<vmem>>, %arg28: memref<1x1x8x32xbf16, #tpu.memory_space<vmem>>, %arg29: memref<8x32xf32, #tpu.memory_space<vmem>>) attributes {dimension_semantics = [#tpu.dimension_semantics<parallel>, #tpu.dimension_semantics<arbitrary>], iteration_bounds = array<i64: 2, 2>, scalar_prefetch = 0 : i64, scratch_operands = 1 : i64, tpu.core_type = #tpu.core_type<tc>, window_params = [{transform_indices = @transform_0, window_bounds = array<i64: 1, 8, 32>}, {transform_indices = @transform_1, window_bounds = array<i64: 1, 8, 16>}, {transform_indices = @transform_2, window_bounds = array<i64: 1, 1, 32>}, {transform_indices = @transform_3, window_bounds = array<i64: 1, 1, 32>}, {transform_indices = @transform_4, window_bounds = array<i64: 1, 1, 32>}, {transform_indices = @transform_5, window_bounds = array<i64: 1, 1, 32>}, {transform_indices = @transform_6, window_bounds = array<i64: 1, 32, 96>}, {transform_indices = @transform_7, window_bounds = array<i64: 1, 1, 96>}, {transform_indices = @transform_8, window_bounds = array<i64: 1, 32, 32>}, {transform_indices = @transform_9, window_bounds = array<i64: 1, 1, 32>}, {transform_indices = @transform_10, window_bounds = array<i64: 1, 32, 8>}, {transform_indices = @transform_11, window_bounds = array<i64: 1, 16, 8>}, {transform_indices = @transform_12, window_bounds = array<i64: 1, 1, 8>}, {transform_indices = @transform_13, window_bounds = array<i64: 1, 8, 32>}, {transform_indices = @transform_14, window_bounds = array<i64: 1, 1, 32>}, {transform_indices = @transform_15, window_bounds = array<i64: 1, 32, 64>}, {transform_indices = @transform_16, window_bounds = array<i64: 1, 1, 64>}, {transform_indices = @transform_17, window_bounds = array<i64: 1, 64, 32>}, {transform_indices = @transform_18, window_bounds = array<i64: 1, 1, 32>}, {transform_indices = @transform_19, window_bounds = array<i64: 1, 32, 8>}, {transform_indices = @transform_20, window_bounds = array<i64: 1, 16, 8>}, {transform_indices = @transform_21, window_bounds = array<i64: 1, 1, 8>}, {transform_indices = @transform_22, window_bounds = array<i64: 1, 8, 32>}, {transform_indices = @transform_23, window_bounds = array<i64: 1, 1, 32>}, {transform_indices = @transform_24, window_bounds = array<i64: 1, 8, 32>}, {transform_indices = @transform_25, window_bounds = array<i64: 1, 1, 8, 32>}, {transform_indices = @transform_26, window_bounds = array<i64: 1, 1, 8, 32>}]} {
    %c0_i32 = arith.constant 0 : i32
    %0 = arith.cmpi eq, %arg1, %c0_i32 : i32
    %1 = arith.extui %0 : i1 to i32
    %c0_i32_0 = arith.constant 0 : i32
    %2 = arith.cmpi ne, %1, %c0_i32_0 : i32
    scf.if %2 {
      %c0_110 = arith.constant 0 : index
      %c0_111 = arith.constant 0 : index
      %c0_112 = arith.constant 0 : index
      %215 = vector.load %arg2[%c0_110, %c0_111, %c0_112] : memref<1x8x32xf32, #tpu.memory_space<vmem>>, vector<1x8x32xf32>
      %216 = vector.shape_cast %215 : vector<1x8x32xf32> to vector<8x32xf32>
      %c0_113 = arith.constant 0 : index
      %c0_114 = arith.constant 0 : index
      %217 = vector.load %arg29[%c0_113, %c0_114] : memref<8x32xf32, #tpu.memory_space<vmem>>, vector<8x32xf32>
      tpu.vector_store %arg29[%c0_113, %c0_114], %216 {strides = array<i32>} : memref<8x32xf32, #tpu.memory_space<vmem>>, vector<8x32xf32>,
    } else {
    }
    %c0 = arith.constant 0 : index
    %c0_1 = arith.constant 0 : index
    %3 = vector.load %arg29[%c0, %c0_1] : memref<8x32xf32, #tpu.memory_space<vmem>>, vector<8x32xf32>
    %c0_2 = arith.constant 0 : index
    %c0_3 = arith.constant 0 : index
    %c0_4 = arith.constant 0 : index
    %4 = vector.load %arg3[%c0_2, %c0_3, %c0_4] : memref<1x8x16xf32, #tpu.memory_space<vmem>>, vector<1x8x16xf32>
    %5 = vector.shape_cast %4 : vector<1x8x16xf32> to vector<8x16xf32>
    %6 = arith.truncf %5 : vector<8x16xf32> to vector<8x16xbf16>
    %c0_5 = arith.constant 0 : index
    %c0_6 = arith.constant 0 : index
    %c0_7 = arith.constant 0 : index
    %7 = vector.load %arg4[%c0_5, %c0_6, %c0_7] : memref<1x1x32xf32, #tpu.memory_space<vmem>>, vector<1x1x32xf32>
    %8 = vector.shape_cast %7 : vector<1x1x32xf32> to vector<1x32xf32>
    %c0_8 = arith.constant 0 : index
    %c0_9 = arith.constant 0 : index
    %c0_10 = arith.constant 0 : index
    %9 = vector.load %arg5[%c0_8, %c0_9, %c0_10] : memref<1x1x32xf32, #tpu.memory_space<vmem>>, vector<1x1x32xf32>
    %10 = vector.shape_cast %9 : vector<1x1x32xf32> to vector<1x32xf32>
    %cst = arith.constant dense<0.000000e+00> : vector<8xf32>
    %11 = vector.multi_reduction <add>, %3, %cst [1] : vector<8x32xf32> to vector<8xf32>
    %12 = vector.shape_cast %11 : vector<8xf32> to vector<8x1xf32>
    %cst_11 = arith.constant 3.200000e+01 : f32
    %13 = vector.broadcast %cst_11 : f32 to vector<8x1xf32>
    %14 = arith.divf %12, %13 : vector<8x1xf32>
    %15 = vector.broadcast %14 : vector<8x1xf32> to vector<8x32xf32>
    %16 = arith.subf %3, %15 : vector<8x32xf32>
    %17 = arith.mulf %16, %16 : vector<8x32xf32>
    %cst_12 = arith.constant dense<0.000000e+00> : vector<8xf32>
    %18 = vector.multi_reduction <add>, %17, %cst_12 [1] : vector<8x32xf32> to vector<8xf32>
    %19 = vector.shape_cast %18 : vector<8xf32> to vector<8x1xf32>
    %cst_13 = arith.constant 3.200000e+01 : f32
    %20 = vector.broadcast %cst_13 : f32 to vector<8x1xf32>
    %21 = arith.divf %19, %20 : vector<8x1xf32>
    %22 = vector.broadcast %14 : vector<8x1xf32> to vector<8x32xf32>
    %23 = arith.subf %3, %22 : vector<8x32xf32>
    %cst_14 = arith.constant 9.99999974E-6 : f32
    %24 = vector.broadcast %cst_14 : f32 to vector<8x1xf32>
    %25 = arith.addf %21, %24 : vector<8x1xf32>
    %26 = math.rsqrt %25 : vector<8x1xf32>
    %27 = vector.broadcast %26 : vector<8x1xf32> to vector<8x32xf32>
    %28 = arith.mulf %23, %27 : vector<8x32xf32>
    %29 = vector.broadcast %8 : vector<1x32xf32> to vector<8x32xf32>
    %30 = arith.mulf %28, %29 : vector<8x32xf32>
    %31 = vector.broadcast %10 : vector<1x32xf32> to vector<8x32xf32>
    %32 = arith.addf %30, %31 : vector<8x32xf32>
    %c0_15 = arith.constant 0 : index
    %c0_16 = arith.constant 0 : index
    %c0_17 = arith.constant 0 : index
    %33 = vector.load %arg6[%c0_15, %c0_16, %c0_17] : memref<1x1x32xf32, #tpu.memory_space<vmem>>, vector<1x1x32xf32>
    %34 = vector.shape_cast %33 : vector<1x1x32xf32> to vector<1x32xf32>
    %c0_18 = arith.constant 0 : index
    %c0_19 = arith.constant 0 : index
    %c0_20 = arith.constant 0 : index
    %35 = vector.load %arg7[%c0_18, %c0_19, %c0_20] : memref<1x1x32xf32, #tpu.memory_space<vmem>>, vector<1x1x32xf32>
    %36 = vector.shape_cast %35 : vector<1x1x32xf32> to vector<1x32xf32>
    %cst_21 = arith.constant dense<0.000000e+00> : vector<8xf32>
    %37 = vector.multi_reduction <add>, %32, %cst_21 [1] : vector<8x32xf32> to vector<8xf32>
    %38 = vector.shape_cast %37 : vector<8xf32> to vector<8x1xf32>
    %cst_22 = arith.constant 3.200000e+01 : f32
    %39 = vector.broadcast %cst_22 : f32 to vector<8x1xf32>
    %40 = arith.divf %38, %39 : vector<8x1xf32>
    %41 = vector.broadcast %40 : vector<8x1xf32> to vector<8x32xf32>
    %42 = arith.subf %32, %41 : vector<8x32xf32>
    %43 = arith.mulf %42, %42 : vector<8x32xf32>
    %cst_23 = arith.constant dense<0.000000e+00> : vector<8xf32>
    %44 = vector.multi_reduction <add>, %43, %cst_23 [1] : vector<8x32xf32> to vector<8xf32>
    %45 = vector.shape_cast %44 : vector<8xf32> to vector<8x1xf32>
    %cst_24 = arith.constant 3.200000e+01 : f32
    %46 = vector.broadcast %cst_24 : f32 to vector<8x1xf32>
    %47 = arith.divf %45, %46 : vector<8x1xf32>
    %48 = vector.broadcast %40 : vector<8x1xf32> to vector<8x32xf32>
    %49 = arith.subf %32, %48 : vector<8x32xf32>
    %cst_25 = arith.constant 9.99999974E-6 : f32
    %50 = vector.broadcast %cst_25 : f32 to vector<8x1xf32>
    %51 = arith.addf %47, %50 : vector<8x1xf32>
    %52 = math.rsqrt %51 : vector<8x1xf32>
    %53 = vector.broadcast %52 : vector<8x1xf32> to vector<8x32xf32>
    %54 = arith.mulf %49, %53 : vector<8x32xf32>
    %55 = vector.broadcast %34 : vector<1x32xf32> to vector<8x32xf32>
    %56 = arith.mulf %54, %55 : vector<8x32xf32>
    %57 = vector.broadcast %36 : vector<1x32xf32> to vector<8x32xf32>
    %58 = arith.addf %56, %57 : vector<8x32xf32>
    %59 = arith.truncf %58 : vector<8x32xf32> to vector<8x32xbf16>
    %c0_26 = arith.constant 0 : index
    %c0_27 = arith.constant 0 : index
    %c0_28 = arith.constant 0 : index
    %60 = vector.load %arg8[%c0_26, %c0_27, %c0_28] : memref<1x32x96xbf16, #tpu.memory_space<vmem>>, vector<1x32x96xbf16>
    %61 = vector.shape_cast %60 : vector<1x32x96xbf16> to vector<32x96xbf16>
    %cst_29 = arith.constant dense<0.000000e+00> : vector<8x96xf32>
    %62 = tpu.matmul %59, %61, %cst_29 {dimension_numbers = #tpu.dot_dimension_numbers<[1], [0], [0], [1], [0, 0, 1, 1], [], []>} : vector<8x32xbf16>, vector<32x96xbf16>, vector<8x96xf32> -> vector<8x96xf32>
    %c0_30 = arith.constant 0 : index
    %c0_31 = arith.constant 0 : index
    %c0_32 = arith.constant 0 : index
    %63 = vector.load %arg9[%c0_30, %c0_31, %c0_32] : memref<1x1x96xf32, #tpu.memory_space<vmem>>, vector<1x1x96xf32>
    %64 = vector.shape_cast %63 : vector<1x1x96xf32> to vector<1x96xf32>
    %65 = vector.broadcast %64 : vector<1x96xf32> to vector<8x96xf32>
    %66 = arith.addf %62, %65 : vector<8x96xf32>
    %67 = vector.extract_strided_slice %66 {offsets = [0, 0], sizes = [8, 32], strides = [1, 1]} : vector<8x96xf32> to vector<8x32xf32>
    %cst_33 = arith.constant 0.353553385 : f32
    %68 = vector.broadcast %cst_33 : f32 to vector<8x32xf32>
    %69 = arith.mulf %67, %68 : vector<8x32xf32>
    %70 = vector.extract_strided_slice %66 {offsets = [0, 32], sizes = [8, 32], strides = [1, 1]} : vector<8x96xf32> to vector<8x32xf32>
    %71 = vector.extract_strided_slice %66 {offsets = [0, 64], sizes = [8, 32], strides = [1, 1]} : vector<8x96xf32> to vector<8x32xf32>
    %72 = vector.extract_strided_slice %69 {offsets = [0, 0], sizes = [8, 8], strides = [1, 1]} : vector<8x32xf32> to vector<8x8xf32>
    %73 = vector.extract_strided_slice %69 {offsets = [0, 8], sizes = [8, 8], strides = [1, 1]} : vector<8x32xf32> to vector<8x8xf32>
    %74 = vector.extract_strided_slice %69 {offsets = [0, 16], sizes = [8, 8], strides = [1, 1]} : vector<8x32xf32> to vector<8x8xf32>
    %75 = vector.extract_strided_slice %69 {offsets = [0, 24], sizes = [8, 8], strides = [1, 1]} : vector<8x32xf32> to vector<8x8xf32>
    %76 = vector.shape_cast %72 : vector<8x8xf32> to vector<1x8x8xf32>
    %77 = vector.shape_cast %73 : vector<8x8xf32> to vector<1x8x8xf32>
    %78 = vector.shape_cast %74 : vector<8x8xf32> to vector<1x8x8xf32>
    %79 = vector.shape_cast %75 : vector<8x8xf32> to vector<1x8x8xf32>
    %80 = tpu.concatenate %76, %77, %78, %79 in 0 : vector<1x8x8xf32>, vector<1x8x8xf32>, vector<1x8x8xf32>, vector<1x8x8xf32> -> vector<4x8x8xf32>
    %81 = arith.truncf %80 : vector<4x8x8xf32> to vector<4x8x8xbf16>
    %82 = vector.extract_strided_slice %70 {offsets = [0, 0], sizes = [8, 8], strides = [1, 1]} : vector<8x32xf32> to vector<8x8xf32>
    %83 = vector.extract_strided_slice %70 {offsets = [0, 8], sizes = [8, 8], strides = [1, 1]} : vector<8x32xf32> to vector<8x8xf32>
    %84 = vector.extract_strided_slice %70 {offsets = [0, 16], sizes = [8, 8], strides = [1, 1]} : vector<8x32xf32> to vector<8x8xf32>
    %85 = vector.extract_strided_slice %70 {offsets = [0, 24], sizes = [8, 8], strides = [1, 1]} : vector<8x32xf32> to vector<8x8xf32>
    %86 = vector.shape_cast %82 : vector<8x8xf32> to vector<1x8x8xf32>
    %87 = vector.shape_cast %83 : vector<8x8xf32> to vector<1x8x8xf32>
    %88 = vector.shape_cast %84 : vector<8x8xf32> to vector<1x8x8xf32>
    %89 = vector.shape_cast %85 : vector<8x8xf32> to vector<1x8x8xf32>
    %90 = tpu.concatenate %86, %87, %88, %89 in 0 : vector<1x8x8xf32>, vector<1x8x8xf32>, vector<1x8x8xf32>, vector<1x8x8xf32> -> vector<4x8x8xf32>
    %91 = arith.truncf %90 : vector<4x8x8xf32> to vector<4x8x8xbf16>
    %92 = vector.extract_strided_slice %71 {offsets = [0, 0], sizes = [8, 8], strides = [1, 1]} : vector<8x32xf32> to vector<8x8xf32>
    %93 = vector.extract_strided_slice %71 {offsets = [0, 8], sizes = [8, 8], strides = [1, 1]} : vector<8x32xf32> to vector<8x8xf32>
    %94 = vector.extract_strided_slice %71 {offsets = [0, 16], sizes = [8, 8], strides = [1, 1]} : vector<8x32xf32> to vector<8x8xf32>
    %95 = vector.extract_strided_slice %71 {offsets = [0, 24], sizes = [8, 8], strides = [1, 1]} : vector<8x32xf32> to vector<8x8xf32>
    %96 = vector.shape_cast %92 : vector<8x8xf32> to vector<1x8x8xf32>
    %97 = vector.shape_cast %93 : vector<8x8xf32> to vector<1x8x8xf32>
    %98 = vector.shape_cast %94 : vector<8x8xf32> to vector<1x8x8xf32>
    %99 = vector.shape_cast %95 : vector<8x8xf32> to vector<1x8x8xf32>
    %100 = tpu.concatenate %96, %97, %98, %99 in 0 : vector<1x8x8xf32>, vector<1x8x8xf32>, vector<1x8x8xf32>, vector<1x8x8xf32> -> vector<4x8x8xf32>
    %101 = arith.truncf %100 : vector<4x8x8xf32> to vector<4x8x8xbf16>
    %cst_34 = arith.constant dense<0.000000e+00> : vector<4x8x8xf32>
    %102 = tpu.matmul %81, %91, %cst_34 {dimension_numbers = #tpu.dot_dimension_numbers<[2], [2], [1], [1], [0, 0, 0, 1, 1, 1], [0], [0]>} : vector<4x8x8xbf16>, vector<4x8x8xbf16>, vector<4x8x8xf32> -> vector<4x8x8xf32>
    %103 = tpu.iota {dimensions = array<i32: 1>} : vector<4x8x8xi32>
    %104 = tpu.iota {dimensions = array<i32: 2>} : vector<4x8x8xi32>
    %105 = arith.cmpi sge, %103, %104 : vector<4x8x8xi32>
    %cst_35 = arith.constant -1.000000e+30 : f32
    %106 = vector.broadcast %cst_35 : f32 to vector<4x8x8xf32>
    %107 = arith.select %105, %102, %106 : vector<4x8x8xi1>, vector<4x8x8xf32>
    %cst_36 = arith.constant dense<0xFF800000> : vector<4x8xf32>
    %108 = vector.multi_reduction <maximumf>, %107, %cst_36 [2] : vector<4x8x8xf32> to vector<4x8xf32>
    %109 = vector.shape_cast %108 : vector<4x8xf32> to vector<4x8x1xf32>
    %110 = vector.broadcast %109 : vector<4x8x1xf32> to vector<4x8x8xf32>
    %111 = arith.subf %107, %110 : vector<4x8x8xf32>
    %112 = math.exp %111 : vector<4x8x8xf32>
    %cst_37 = arith.constant dense<0.000000e+00> : vector<4x8xf32>
    %113 = vector.multi_reduction <add>, %112, %cst_37 [2] : vector<4x8x8xf32> to vector<4x8xf32>
    %114 = vector.shape_cast %113 : vector<4x8xf32> to vector<4x8x1xf32>
    %115 = tpu.reciprocal %114 {approx = true} : vector<4x8x1xf32> -> vector<4x8x1xf32>
    %116 = arith.truncf %112 : vector<4x8x8xf32> to vector<4x8x8xbf16>
    %cst_38 = arith.constant dense<0.000000e+00> : vector<4x8x8xf32>
    %117 = tpu.matmul %116, %101, %cst_38 {dimension_numbers = #tpu.dot_dimension_numbers<[2], [1], [1], [2], [0, 0, 0, 1, 1, 2], [0], [0]>} : vector<4x8x8xbf16>, vector<4x8x8xbf16>, vector<4x8x8xf32> -> vector<4x8x8xf32>
    %118 = vector.broadcast %115 : vector<4x8x1xf32> to vector<4x8x8xf32>
    %119 = arith.mulf %117, %118 : vector<4x8x8xf32>
    %120 = vector.extract_strided_slice %119 {offsets = [0, 0, 0], sizes = [1, 8, 8], strides = [1, 1, 1]} : vector<4x8x8xf32> to vector<1x8x8xf32>
    %121 = vector.shape_cast %120 : vector<1x8x8xf32> to vector<8x8xf32>
    %122 = vector.extract_strided_slice %119 {offsets = [1, 0, 0], sizes = [1, 8, 8], strides = [1, 1, 1]} : vector<4x8x8xf32> to vector<1x8x8xf32>
    %123 = vector.shape_cast %122 : vector<1x8x8xf32> to vector<8x8xf32>
    %124 = vector.extract_strided_slice %119 {offsets = [2, 0, 0], sizes = [1, 8, 8], strides = [1, 1, 1]} : vector<4x8x8xf32> to vector<1x8x8xf32>
    %125 = vector.shape_cast %124 : vector<1x8x8xf32> to vector<8x8xf32>
    %126 = vector.extract_strided_slice %119 {offsets = [3, 0, 0], sizes = [1, 8, 8], strides = [1, 1, 1]} : vector<4x8x8xf32> to vector<1x8x8xf32>
    %127 = vector.shape_cast %126 : vector<1x8x8xf32> to vector<8x8xf32>
    %128 = tpu.concatenate %121, %123, %125, %127 in 1 : vector<8x8xf32>, vector<8x8xf32>, vector<8x8xf32>, vector<8x8xf32> -> vector<8x32xf32>
    %129 = arith.truncf %128 : vector<8x32xf32> to vector<8x32xbf16>
    %c0_39 = arith.constant 0 : index
    %c0_40 = arith.constant 0 : index
    %c0_41 = arith.constant 0 : index
    %130 = vector.load %arg10[%c0_39, %c0_40, %c0_41] : memref<1x32x32xbf16, #tpu.memory_space<vmem>>, vector<1x32x32xbf16>
    %131 = vector.shape_cast %130 : vector<1x32x32xbf16> to vector<32x32xbf16>
    %cst_42 = arith.constant dense<0.000000e+00> : vector<8x32xf32>
    %132 = tpu.matmul %129, %131, %cst_42 {dimension_numbers = #tpu.dot_dimension_numbers<[1], [0], [0], [1], [0, 0, 1, 1], [], []>} : vector<8x32xbf16>, vector<32x32xbf16>, vector<8x32xf32> -> vector<8x32xf32>
    %c0_43 = arith.constant 0 : index
    %c0_44 = arith.constant 0 : index
    %c0_45 = arith.constant 0 : index
    %133 = vector.load %arg11[%c0_43, %c0_44, %c0_45] : memref<1x1x32xf32, #tpu.memory_space<vmem>>, vector<1x1x32xf32>
    %134 = vector.shape_cast %133 : vector<1x1x32xf32> to vector<1x32xf32>
    %135 = vector.broadcast %134 : vector<1x32xf32> to vector<8x32xf32>
    %136 = arith.addf %132, %135 : vector<8x32xf32>
    %137 = arith.truncf %136 : vector<8x32xf32> to vector<8x32xbf16>
    %c0_46 = arith.constant 0 : index
    %c0_47 = arith.constant 0 : index
    %c0_48 = arith.constant 0 : index
    %138 = vector.load %arg12[%c0_46, %c0_47, %c0_48] : memref<1x32x8xbf16, #tpu.memory_space<vmem>>, vector<1x32x8xbf16>
    %139 = vector.shape_cast %138 : vector<1x32x8xbf16> to vector<32x8xbf16>
    %cst_49 = arith.constant dense<0.000000e+00> : vector<8x8xf32>
    %140 = tpu.matmul %137, %139, %cst_49 {dimension_numbers = #tpu.dot_dimension_numbers<[1], [0], [0], [1], [0, 0, 1, 1], [], []>} : vector<8x32xbf16>, vector<32x8xbf16>, vector<8x8xf32> -> vector<8x8xf32>
    %c0_50 = arith.constant 0 : index
    %c0_51 = arith.constant 0 : index
    %c0_52 = arith.constant 0 : index
    %141 = vector.load %arg13[%c0_50, %c0_51, %c0_52] : memref<1x16x8xbf16, #tpu.memory_space<vmem>>, vector<1x16x8xbf16>
    %142 = vector.shape_cast %141 : vector<1x16x8xbf16> to vector<16x8xbf16>
    %cst_53 = arith.constant dense<0.000000e+00> : vector<8x8xf32>
    %143 = tpu.matmul %6, %142, %cst_53 {dimension_numbers = #tpu.dot_dimension_numbers<[1], [0], [0], [1], [0, 0, 1, 1], [], []>} : vector<8x16xbf16>, vector<16x8xbf16>, vector<8x8xf32> -> vector<8x8xf32>
    %144 = arith.addf %140, %143 : vector<8x8xf32>
    %c0_54 = arith.constant 0 : index
    %c0_55 = arith.constant 0 : index
    %c0_56 = arith.constant 0 : index
    %145 = vector.load %arg14[%c0_54, %c0_55, %c0_56] : memref<1x1x8xf32, #tpu.memory_space<vmem>>, vector<1x1x8xf32>
    %146 = vector.shape_cast %145 : vector<1x1x8xf32> to vector<1x8xf32>
    %147 = vector.broadcast %146 : vector<1x8xf32> to vector<8x8xf32>
    %148 = arith.addf %144, %147 : vector<8x8xf32>
    %cst_57 = arith.constant 0.000000e+00 : f32
    %149 = vector.broadcast %cst_57 : f32 to vector<8x8xf32>
    %150 = arith.maximumf %148, %149 : vector<8x8xf32>
    %151 = arith.truncf %150 : vector<8x8xf32> to vector<8x8xbf16>
    %c0_58 = arith.constant 0 : index
    %c0_59 = arith.constant 0 : index
    %c0_60 = arith.constant 0 : index
    %152 = vector.load %arg15[%c0_58, %c0_59, %c0_60] : memref<1x8x32xbf16, #tpu.memory_space<vmem>>, vector<1x8x32xbf16>
    %153 = vector.shape_cast %152 : vector<1x8x32xbf16> to vector<8x32xbf16>
    %cst_61 = arith.constant dense<0.000000e+00> : vector<8x32xf32>
    %154 = tpu.matmul %151, %153, %cst_61 {dimension_numbers = #tpu.dot_dimension_numbers<[1], [0], [0], [1], [0, 0, 1, 1], [], []>} : vector<8x8xbf16>, vector<8x32xbf16>, vector<8x32xf32> -> vector<8x32xf32>
    %c0_62 = arith.constant 0 : index
    %c0_63 = arith.constant 0 : index
    %c0_64 = arith.constant 0 : index
    %155 = vector.load %arg16[%c0_62, %c0_63, %c0_64] : memref<1x1x32xf32, #tpu.memory_space<vmem>>, vector<1x1x32xf32>
    %156 = vector.shape_cast %155 : vector<1x1x32xf32> to vector<1x32xf32>
    %157 = vector.broadcast %156 : vector<1x32xf32> to vector<8x32xf32>
    %158 = arith.addf %154, %157 : vector<8x32xf32>
    %159 = arith.addf %136, %158 : vector<8x32xf32>
    %160 = arith.addf %32, %159 : vector<8x32xf32>
    %161 = arith.truncf %160 : vector<8x32xf32> to vector<8x32xbf16>
    %c0_65 = arith.constant 0 : index
    %c0_66 = arith.constant 0 : index
    %c0_67 = arith.constant 0 : index
    %162 = vector.load %arg17[%c0_65, %c0_66, %c0_67] : memref<1x32x64xbf16, #tpu.memory_space<vmem>>, vector<1x32x64xbf16>
    %163 = vector.shape_cast %162 : vector<1x32x64xbf16> to vector<32x64xbf16>
    %cst_68 = arith.constant dense<0.000000e+00> : vector<8x64xf32>
    %164 = tpu.matmul %161, %163, %cst_68 {dimension_numbers = #tpu.dot_dimension_numbers<[1], [0], [0], [1], [0, 0, 1, 1], [], []>} : vector<8x32xbf16>, vector<32x64xbf16>, vector<8x64xf32> -> vector<8x64xf32>
    %c0_69 = arith.constant 0 : index
    %c0_70 = arith.constant 0 : index
    %c0_71 = arith.constant 0 : index
    %165 = vector.load %arg18[%c0_69, %c0_70, %c0_71] : memref<1x1x64xf32, #tpu.memory_space<vmem>>, vector<1x1x64xf32>
    %166 = vector.shape_cast %165 : vector<1x1x64xf32> to vector<1x64xf32>
    %167 = vector.broadcast %166 : vector<1x64xf32> to vector<8x64xf32>
    %168 = arith.addf %164, %167 : vector<8x64xf32>
    %cst_72 = arith.constant 0.000000e+00 : f32
    %169 = vector.broadcast %cst_72 : f32 to vector<8x64xf32>
    %170 = arith.maximumf %168, %169 : vector<8x64xf32>
    %171 = arith.truncf %170 : vector<8x64xf32> to vector<8x64xbf16>
    %c0_73 = arith.constant 0 : index
    %c0_74 = arith.constant 0 : index
    %c0_75 = arith.constant 0 : index
    %172 = vector.load %arg19[%c0_73, %c0_74, %c0_75] : memref<1x64x32xbf16, #tpu.memory_space<vmem>>, vector<1x64x32xbf16>
    %173 = vector.shape_cast %172 : vector<1x64x32xbf16> to vector<64x32xbf16>
    %cst_76 = arith.constant dense<0.000000e+00> : vector<8x32xf32>
    %174 = tpu.matmul %171, %173, %cst_76 {dimension_numbers = #tpu.dot_dimension_numbers<[1], [0], [0], [1], [0, 0, 1, 1], [], []>} : vector<8x64xbf16>, vector<64x32xbf16>, vector<8x32xf32> -> vector<8x32xf32>
    %c0_77 = arith.constant 0 : index
    %c0_78 = arith.constant 0 : index
    %c0_79 = arith.constant 0 : index
    %175 = vector.load %arg20[%c0_77, %c0_78, %c0_79] : memref<1x1x32xf32, #tpu.memory_space<vmem>>, vector<1x1x32xf32>
    %176 = vector.shape_cast %175 : vector<1x1x32xf32> to vector<1x32xf32>
    %177 = vector.broadcast %176 : vector<1x32xf32> to vector<8x32xf32>
    %178 = arith.addf %174, %177 : vector<8x32xf32>
    %179 = arith.truncf %178 : vector<8x32xf32> to vector<8x32xbf16>
    %c0_80 = arith.constant 0 : index
    %c0_81 = arith.constant 0 : index
    %c0_82 = arith.constant 0 : index
    %180 = vector.load %arg21[%c0_80, %c0_81, %c0_82] : memref<1x32x8xbf16, #tpu.memory_space<vmem>>, vector<1x32x8xbf16>
    %181 = vector.shape_cast %180 : vector<1x32x8xbf16> to vector<32x8xbf16>
    %cst_83 = arith.constant dense<0.000000e+00> : vector<8x8xf32>
    %182 = tpu.matmul %179, %181, %cst_83 {dimension_numbers = #tpu.dot_dimension_numbers<[1], [0], [0], [1], [0, 0, 1, 1], [], []>} : vector<8x32xbf16>, vector<32x8xbf16>, vector<8x8xf32> -> vector<8x8xf32>
    %c0_84 = arith.constant 0 : index
    %c0_85 = arith.constant 0 : index
    %c0_86 = arith.constant 0 : index
    %183 = vector.load %arg22[%c0_84, %c0_85, %c0_86] : memref<1x16x8xbf16, #tpu.memory_space<vmem>>, vector<1x16x8xbf16>
    %184 = vector.shape_cast %183 : vector<1x16x8xbf16> to vector<16x8xbf16>
    %cst_87 = arith.constant dense<0.000000e+00> : vector<8x8xf32>
    %185 = tpu.matmul %6, %184, %cst_87 {dimension_numbers = #tpu.dot_dimension_numbers<[1], [0], [0], [1], [0, 0, 1, 1], [], []>} : vector<8x16xbf16>, vector<16x8xbf16>, vector<8x8xf32> -> vector<8x8xf32>
    %186 = arith.addf %182, %185 : vector<8x8xf32>
    %c0_88 = arith.constant 0 : index
    %c0_89 = arith.constant 0 : index
    %c0_90 = arith.constant 0 : index
    %187 = vector.load %arg23[%c0_88, %c0_89, %c0_90] : memref<1x1x8xf32, #tpu.memory_space<vmem>>, vector<1x1x8xf32>
    %188 = vector.shape_cast %187 : vector<1x1x8xf32> to vector<1x8xf32>
    %189 = vector.broadcast %188 : vector<1x8xf32> to vector<8x8xf32>
    %190 = arith.addf %186, %189 : vector<8x8xf32>
    %cst_91 = arith.constant 0.000000e+00 : f32
    %191 = vector.broadcast %cst_91 : f32 to vector<8x8xf32>
    %192 = arith.maximumf %190, %191 : vector<8x8xf32>
    %193 = arith.truncf %192 : vector<8x8xf32> to vector<8x8xbf16>
    %c0_92 = arith.constant 0 : index
    %c0_93 = arith.constant 0 : index
    %c0_94 = arith.constant 0 : index
    %194 = vector.load %arg24[%c0_92, %c0_93, %c0_94] : memref<1x8x32xbf16, #tpu.memory_space<vmem>>, vector<1x8x32xbf16>
    %195 = vector.shape_cast %194 : vector<1x8x32xbf16> to vector<8x32xbf16>
    %cst_95 = arith.constant dense<0.000000e+00> : vector<8x32xf32>
    %196 = tpu.matmul %193, %195, %cst_95 {dimension_numbers = #tpu.dot_dimension_numbers<[1], [0], [0], [1], [0, 0, 1, 1], [], []>} : vector<8x8xbf16>, vector<8x32xbf16>, vector<8x32xf32> -> vector<8x32xf32>
    %c0_96 = arith.constant 0 : index
    %c0_97 = arith.constant 0 : index
    %c0_98 = arith.constant 0 : index
    %197 = vector.load %arg25[%c0_96, %c0_97, %c0_98] : memref<1x1x32xf32, #tpu.memory_space<vmem>>, vector<1x1x32xf32>
    %198 = vector.shape_cast %197 : vector<1x1x32xf32> to vector<1x32xf32>
    %199 = vector.broadcast %198 : vector<1x32xf32> to vector<8x32xf32>
    %200 = arith.addf %196, %199 : vector<8x32xf32>
    %201 = arith.addf %178, %200 : vector<8x32xf32>
    %202 = arith.addf %160, %201 : vector<8x32xf32>
    %c0_99 = arith.constant 0 : index
    %c0_100 = arith.constant 0 : index
    %203 = vector.load %arg29[%c0_99, %c0_100] : memref<8x32xf32, #tpu.memory_space<vmem>>, vector<8x32xf32>
    tpu.vector_store %arg29[%c0_99, %c0_100], %202 {strides = array<i32>} : memref<8x32xf32, #tpu.memory_space<vmem>>, vector<8x32xf32>,
    %204 = arith.truncf %70 : vector<8x32xf32> to vector<8x32xbf16>
    %c0_101 = arith.constant 0 : index
    %c0_102 = arith.constant 0 : index
    %c0_103 = arith.constant 0 : index
    %c0_104 = arith.constant 0 : index
    %205 = vector.load %arg27[%c0_101, %c0_102, %c0_103, %c0_104] : memref<1x1x8x32xbf16, #tpu.memory_space<vmem>>, vector<1x1x8x32xbf16>
    %206 = vector.shape_cast %205 : vector<1x1x8x32xbf16> to vector<8x32xbf16>
    %207 = vector.shape_cast %204 : vector<8x32xbf16> to vector<1x1x8x32xbf16>
    tpu.vector_store %arg27[%c0_101, %c0_102, %c0_103, %c0_104], %207 {strides = array<i32>} : memref<1x1x8x32xbf16, #tpu.memory_space<vmem>>, vector<1x1x8x32xbf16>,
    %208 = arith.truncf %71 : vector<8x32xf32> to vector<8x32xbf16>
    %c0_105 = arith.constant 0 : index
    %c0_106 = arith.constant 0 : index
    %c0_107 = arith.constant 0 : index
    %c0_108 = arith.constant 0 : index
    %209 = vector.load %arg28[%c0_105, %c0_106, %c0_107, %c0_108] : memref<1x1x8x32xbf16, #tpu.memory_space<vmem>>, vector<1x1x8x32xbf16>
    %210 = vector.shape_cast %209 : vector<1x1x8x32xbf16> to vector<8x32xbf16>
    %211 = vector.shape_cast %208 : vector<8x32xbf16> to vector<1x1x8x32xbf16>
    tpu.vector_store %arg28[%c0_105, %c0_106, %c0_107, %c0_108], %211 {strides = array<i32>} : memref<1x1x8x32xbf16, #tpu.memory_space<vmem>>, vector<1x1x8x32xbf16>,
    %c1_i32 = arith.constant 1 : i32
    %212 = arith.cmpi eq, %arg1, %c1_i32 : i32
    %213 = arith.extui %212 : i1 to i32
    %c0_i32_109 = arith.constant 0 : i32
    %214 = arith.cmpi ne, %213, %c0_i32_109 : i32
    scf.if %214 {
      %c0_110 = arith.constant 0 : index
      %c0_111 = arith.constant 0 : index
      %215 = vector.load %arg29[%c0_110, %c0_111] : memref<8x32xf32, #tpu.memory_space<vmem>>, vector<8x32xf32>
      %c0_112 = arith.constant 0 : index
      %c0_113 = arith.constant 0 : index
      %c0_114 = arith.constant 0 : index
      %216 = vector.load %arg26[%c0_112, %c0_113, %c0_114] : memref<1x8x32xf32, #tpu.memory_space<vmem>>, vector<1x8x32xf32>
      %217 = vector.shape_cast %216 : vector<1x8x32xf32> to vector<8x32xf32>
      %218 = vector.shape_cast %215 : vector<8x32xf32> to vector<1x8x32xf32>
      tpu.vector_store %arg26[%c0_112, %c0_113, %c0_114], %218 {strides = array<i32>} : memref<1x8x32xf32, #tpu.memory_space<vmem>>, vector<1x8x32xf32>,
    } else {
    }
    return
  }
  func.func @transform_0(%arg0: i32, %arg1: i32) -> (i32, i32, i32) {
    %c0_i32 = arith.constant 0 : i32
    %c0_i32_0 = arith.constant 0 : i32
    %c0_i32_1 = arith.constant 0 : i32
    return %arg0, %c0_i32, %c0_i32_0 : i32, i32, i32
  }
  func.func @transform_1(%arg0: i32, %arg1: i32) -> (i32, i32, i32) {
    %c0_i32 = arith.constant 0 : i32
    %c0_i32_0 = arith.constant 0 : i32
    %c0_i32_1 = arith.constant 0 : i32
    return %arg0, %c0_i32, %c0_i32_0 : i32, i32, i32
  }
  func.func @transform_2(%arg0: i32, %arg1: i32) -> (i32, i32, i32) {
    %c0_i32 = arith.constant 0 : i32
    %c0_i32_0 = arith.constant 0 : i32
    %c0_i32_1 = arith.constant 0 : i32
    return %arg1, %c0_i32, %c0_i32_0 : i32, i32, i32
  }
  func.func @transform_3(%arg0: i32, %arg1: i32) -> (i32, i32, i32) {
    %c0_i32 = arith.constant 0 : i32
    %c0_i32_0 = arith.constant 0 : i32
    %c0_i32_1 = arith.constant 0 : i32
    return %arg1, %c0_i32, %c0_i32_0 : i32, i32, i32
  }
  func.func @transform_4(%arg0: i32, %arg1: i32) -> (i32, i32, i32) {
    %c0_i32 = arith.constant 0 : i32
    %c0_i32_0 = arith.constant 0 : i32
    %c0_i32_1 = arith.constant 0 : i32
    return %arg1, %c0_i32, %c0_i32_0 : i32, i32, i32
  }
  func.func @transform_5(%arg0: i32, %arg1: i32) -> (i32, i32, i32) {
    %c0_i32 = arith.constant 0 : i32
    %c0_i32_0 = arith.constant 0 : i32
    %c0_i32_1 = arith.constant 0 : i32
    return %arg1, %c0_i32, %c0_i32_0 : i32, i32, i32
  }
  func.func @transform_6(%arg0: i32, %arg1: i32) -> (i32, i32, i32) {
    %c0_i32 = arith.constant 0 : i32
    %c0_i32_0 = arith.constant 0 : i32
    %c0_i32_1 = arith.constant 0 : i32
    return %arg1, %c0_i32, %c0_i32_0 : i32, i32, i32
  }
  func.func @transform_7(%arg0: i32, %arg1: i32) -> (i32, i32, i32) {
    %c0_i32 = arith.constant 0 : i32
    %c0_i32_0 = arith.constant 0 : i32
    %c0_i32_1 = arith.constant 0 : i32
    return %arg1, %c0_i32, %c0_i32_0 : i32, i32, i32
  }
  func.func @transform_8(%arg0: i32, %arg1: i32) -> (i32, i32, i32) {
    %c0_i32 = arith.constant 0 : i32
    %c0_i32_0 = arith.constant 0 : i32
    %c0_i32_1 = arith.constant 0 : i32
    return %arg1, %c0_i32, %c0_i32_0 : i32, i32, i32
  }
  func.func @transform_9(%arg0: i32, %arg1: i32) -> (i32, i32, i32) {
    %c0_i32 = arith.constant 0 : i32
    %c0_i32_0 = arith.constant 0 : i32
    %c0_i32_1 = arith.constant 0 : i32
    return %arg1, %c0_i32, %c0_i32_0 : i32, i32, i32
  }
  func.func @transform_10(%arg0: i32, %arg1: i32) -> (i32, i32, i32) {
    %c0_i32 = arith.constant 0 : i32
    %c0_i32_0 = arith.constant 0 : i32
    %c0_i32_1 = arith.constant 0 : i32
    return %arg1, %c0_i32, %c0_i32_0 : i32, i32, i32
  }
  func.func @transform_11(%arg0: i32, %arg1: i32) -> (i32, i32, i32) {
    %c0_i32 = arith.constant 0 : i32
    %c0_i32_0 = arith.constant 0 : i32
    %c0_i32_1 = arith.constant 0 : i32
    return %arg1, %c0_i32, %c0_i32_0 : i32, i32, i32
  }
  func.func @transform_12(%arg0: i32, %arg1: i32) -> (i32, i32, i32) {
    %c0_i32 = arith.constant 0 : i32
    %c0_i32_0 = arith.constant 0 : i32
    %c0_i32_1 = arith.constant 0 : i32
    return %arg1, %c0_i32, %c0_i32_0 : i32, i32, i32
  }
  func.func @transform_13(%arg0: i32, %arg1: i32) -> (i32, i32, i32) {
    %c0_i32 = arith.constant 0 : i32
    %c0_i32_0 = arith.constant 0 : i32
    %c0_i32_1 = arith.constant 0 : i32
    return %arg1, %c0_i32, %c0_i32_0 : i32, i32, i32
  }
  func.func @transform_14(%arg0: i32, %arg1: i32) -> (i32, i32, i32) {
    %c0_i32 = arith.constant 0 : i32
    %c0_i32_0 = arith.constant 0 : i32
    %c0_i32_1 = arith.constant 0 : i32
    return %arg1, %c0_i32, %c0_i32_0 : i32, i32, i32
  }
  func.func @transform_15(%arg0: i32, %arg1: i32) -> (i32, i32, i32) {
    %c0_i32 = arith.constant 0 : i32
    %c0_i32_0 = arith.constant 0 : i32
    %c0_i32_1 = arith.constant 0 : i32
    return %arg1, %c0_i32, %c0_i32_0 : i32, i32, i32
  }
  func.func @transform_16(%arg0: i32, %arg1: i32) -> (i32, i32, i32) {
    %c0_i32 = arith.constant 0 : i32
    %c0_i32_0 = arith.constant 0 : i32
    %c0_i32_1 = arith.constant 0 : i32
    return %arg1, %c0_i32, %c0_i32_0 : i32, i32, i32
  }
  func.func @transform_17(%arg0: i32, %arg1: i32) -> (i32, i32, i32) {
    %c0_i32 = arith.constant 0 : i32
    %c0_i32_0 = arith.constant 0 : i32
    %c0_i32_1 = arith.constant 0 : i32
    return %arg1, %c0_i32, %c0_i32_0 : i32, i32, i32
  }
  func.func @transform_18(%arg0: i32, %arg1: i32) -> (i32, i32, i32) {
    %c0_i32 = arith.constant 0 : i32
    %c0_i32_0 = arith.constant 0 : i32
    %c0_i32_1 = arith.constant 0 : i32
    return %arg1, %c0_i32, %c0_i32_0 : i32, i32, i32
  }
  func.func @transform_19(%arg0: i32, %arg1: i32) -> (i32, i32, i32) {
    %c0_i32 = arith.constant 0 : i32
    %c0_i32_0 = arith.constant 0 : i32
    %c0_i32_1 = arith.constant 0 : i32
    return %arg1, %c0_i32, %c0_i32_0 : i32, i32, i32
  }
  func.func @transform_20(%arg0: i32, %arg1: i32) -> (i32, i32, i32) {
    %c0_i32 = arith.constant 0 : i32
    %c0_i32_0 = arith.constant 0 : i32
    %c0_i32_1 = arith.constant 0 : i32
    return %arg1, %c0_i32, %c0_i32_0 : i32, i32, i32
  }
  func.func @transform_21(%arg0: i32, %arg1: i32) -> (i32, i32, i32) {
    %c0_i32 = arith.constant 0 : i32
    %c0_i32_0 = arith.constant 0 : i32
    %c0_i32_1 = arith.constant 0 : i32
    return %arg1, %c0_i32, %c0_i32_0 : i32, i32, i32
  }
  func.func @transform_22(%arg0: i32, %arg1: i32) -> (i32, i32, i32) {
    %c0_i32 = arith.constant 0 : i32
    %c0_i32_0 = arith.constant 0 : i32
    %c0_i32_1 = arith.constant 0 : i32
    return %arg1, %c0_i32, %c0_i32_0 : i32, i32, i32
  }
  func.func @transform_23(%arg0: i32, %arg1: i32) -> (i32, i32, i32) {
    %c0_i32 = arith.constant 0 : i32
    %c0_i32_0 = arith.constant 0 : i32
    %c0_i32_1 = arith.constant 0 : i32
    return %arg1, %c0_i32, %c0_i32_0 : i32, i32, i32
  }
  func.func @transform_24(%arg0: i32, %arg1: i32) -> (i32, i32, i32) {
    %c0_i32 = arith.constant 0 : i32
    %c0_i32_0 = arith.constant 0 : i32
    %c0_i32_1 = arith.constant 0 : i32
    return %arg0, %c0_i32, %c0_i32_0 : i32, i32, i32
  }
  func.func @transform_25(%arg0: i32, %arg1: i32) -> (i32, i32, i32, i32) {
    %c0_i32 = arith.constant 0 : i32
    %c0_i32_0 = arith.constant 0 : i32
    %c0_i32_1 = arith.constant 0 : i32
    return %arg1, %arg0, %c0_i32, %c0_i32_0 : i32, i32, i32, i32
  }
  func.func @transform_26(%arg0: i32, %arg1: i32) -> (i32, i32, i32, i32) {
    %c0_i32 = arith.constant 0 : i32
    %c0_i32_0 = arith.constant 0 : i32
    %c0_i32_1 = arith.constant 0 : i32
    return %arg1, %arg0, %c0_i32, %c0_i32_0 : i32, i32, i32, i32
  }
}

</mosaic_0001>

<llo_original>
// kernel: tpu_custom_call.1
$region0: #{tpu_custom_call.1}
  #allocation0 [shape = 'u32[]', space=smem, size = 0x4, offset = 0x4, fixed_abs, tag = 'smem constant byte address 0x4 - core index']
  #allocation1 [shape = 'u32[72,128]{1,0:T(1,128)}', space=vmem, size = 0x9000, scoped, tag = 'internal scratch']
  #allocation2 [shape = 'f32[8,32]{1,0:T(8,128)}', space=vmem, size = 0x1000, scoped, tag = 'scratch operand']
  %s0 = inlined_call_operand.vmem [shape: f32[2,8,32], index: 0, kind: input, shape index: {}]
  %s1 = inlined_call_operand.vmem [shape: f32[2,8,16], index: 1, kind: input, shape index: {}]
  %s2 = inlined_call_operand.vmem [shape: f32[2,1,32], index: 2, kind: input, shape index: {}]
  %s3 = inlined_call_operand.vmem [shape: f32[2,1,32], index: 3, kind: input, shape index: {}]
  %s4 = inlined_call_operand.vmem [shape: f32[2,1,32], index: 4, kind: input, shape index: {}]
  %s5 = inlined_call_operand.vmem [shape: f32[2,1,32], index: 5, kind: input, shape index: {}]
  %s6 = inlined_call_operand.vmem [shape: bf16[2,32,96], index: 6, kind: input, shape index: {}]
  %s7 = inlined_call_operand.vmem [shape: f32[2,1,96], index: 7, kind: input, shape index: {}]
  %s8 = inlined_call_operand.vmem [shape: bf16[2,32,32], index: 8, kind: input, shape index: {}]
  %s9 = inlined_call_operand.vmem [shape: f32[2,1,32], index: 9, kind: input, shape index: {}]
  %s10 = inlined_call_operand.vmem [shape: bf16[2,32,8], index: 10, kind: input, shape index: {}]
  %s11 = inlined_call_operand.vmem [shape: bf16[2,16,8], index: 11, kind: input, shape index: {}]
  %s12 = inlined_call_operand.vmem [shape: f32[2,1,8], index: 12, kind: input, shape index: {}]
  %s13 = inlined_call_operand.vmem [shape: bf16[2,8,32], index: 13, kind: input, shape index: {}]
  %s14 = inlined_call_operand.vmem [shape: f32[2,1,32], index: 14, kind: input, shape index: {}]
  %s15 = inlined_call_operand.vmem [shape: bf16[2,32,64], index: 15, kind: input, shape index: {}]
  %s16 = inlined_call_operand.vmem [shape: f32[2,1,64], index: 16, kind: input, shape index: {}]
  %s17 = inlined_call_operand.vmem [shape: bf16[2,64,32], index: 17, kind: input, shape index: {}]
  %s18 = inlined_call_operand.vmem [shape: f32[2,1,32], index: 18, kind: input, shape index: {}]
  %s19 = inlined_call_operand.vmem [shape: bf16[2,32,8], index: 19, kind: input, shape index: {}]
  %s20 = inlined_call_operand.vmem [shape: bf16[2,16,8], index: 20, kind: input, shape index: {}]
  %s21 = inlined_call_operand.vmem [shape: f32[2,1,8], index: 21, kind: input, shape index: {}]
  %s22 = inlined_call_operand.vmem [shape: bf16[2,8,32], index: 22, kind: input, shape index: {}]
  %s23 = inlined_call_operand.vmem [shape: f32[2,1,32], index: 23, kind: input, shape index: {}]
  %s24 = inlined_call_operand.hbm [shape: f32[2,8,32], index: 24, kind: output, shape index: {0}]
  %s25 = inlined_call_operand.hbm [shape: bf16[2,2,8,32], index: 25, kind: output, shape index: {1}]
  %s26 = inlined_call_operand.hbm [shape: bf16[2,2,8,32], index: 26, kind: output, shape index: {2}]
  %27 = xla_tuple %s24, %s25, %s26
  %s28 = sld [smem:[#allocation0]]
  $region153: #{tpu_custom_call.1} parent=0
    _
  %s30 = ssub.s32 1, %s28
  %s31 = scalar_select 0, %s30, %s28
  $region1: #{tpu_custom_call.1} parent=0
    #allocation3 [shape = 'u8[8192]{0}', space=vmem, size = 0x2000, scoped, tag = 'output window, operand 0']
    #allocation4 [shape = 's32[2]{0}', space=sflag, size = 0x8, scoped, tag = 'scoped memory for tpu_custom_call.1']
    #allocation5 [shape = 'u8[4096]{0}', space=vmem, size = 0x1000, scoped, tag = 'output window, operand 1']
    #allocation6 [shape = 's32[2]{0}', space=sflag, size = 0x8, scoped, tag = 'scoped memory for tpu_custom_call.1']
    #allocation7 [shape = 'u8[4096]{0}', space=vmem, size = 0x1000, scoped, tag = 'output window, operand 2']
    %32 = vsyncpa [#allocation4], 0
    %s33 = scalar_lea.sflag [#allocation4], 1
    %34 = vsyncpa %s33, 0
    %35 = vsyncpa [#allocation6], 0
    %s36 = scalar_lea.sflag [#allocation6], 1
    %37 = vsyncpa %s36, 0
    loop: start=0, step=1, limit=6
    $region2: #{tpu_custom_call.1} parent=1 // loop_pre_header
      _
    $region3: #{tpu_custom_call.1} parent=1 // loop_header
      %s39 = sphi 0, %s43
      %p40 = scmp.ge.s32.totalorder %s39, 6
      %s46 = sphi 0, %s58
      %s47 = sphi 0, %s54
      %s48 = sphi 0, %s46
      %s49 = sphi 0, %s47
      %s50 = sphi 0, %s48
      %s51 = sphi 0, %s49
      %s61 = sphi 0, %s63
      %s64 = sphi 0, %s61
      %s65 = sphi 0, %s64
      %s81 = sphi 0, %s65
      %s87 = sphi 0, %s89
      %s90 = sphi 0, %s87
      %s91 = sphi 0, %s90
      %s107 = sphi 0, %s91
      %s113 = sphi 0, %s115
      %s116 = sphi 0, %s113
      %s117 = sphi 0, %s116
      %s133 = sphi 0, %s117
      %s139 = sphi 0, %s141
      %s142 = sphi 0, %s139
      %s143 = sphi 0, %s142
      %s159 = sphi 0, %s143
      %s165 = sphi 0, %s167
      %s168 = sphi 0, %s165
      %s169 = sphi 0, %s168
      %s185 = sphi 0, %s169
      %s191 = sphi 0, %s193
      %s194 = sphi 0, %s191
      %s195 = sphi 0, %s194
      %s211 = sphi 0, %s195
      %s217 = sphi 0, %s219
      %s220 = sphi 0, %s217
      %s221 = sphi 0, %s220
      %s237 = sphi 0, %s221
      %s243 = sphi 0, %s245
      %s246 = sphi 0, %s243
      %s247 = sphi 0, %s246
      %s263 = sphi 0, %s247
      %s269 = sphi 0, %s271
      %s272 = sphi 0, %s269
      %s273 = sphi 0, %s272
      %s289 = sphi 0, %s273
      %s295 = sphi 0, %s297
      %s298 = sphi 0, %s295
      %s299 = sphi 0, %s298
      %s315 = sphi 0, %s299
      %s321 = sphi 0, %s323
      %s324 = sphi 0, %s321
      %s325 = sphi 0, %s324
      %s341 = sphi 0, %s325
      %s347 = sphi 0, %s349
      %s350 = sphi 0, %s347
      %s351 = sphi 0, %s350
      %s367 = sphi 0, %s351
      %s373 = sphi 0, %s375
      %s376 = sphi 0, %s373
      %s377 = sphi 0, %s376
      %s393 = sphi 0, %s377
      %s399 = sphi 0, %s401
      %s402 = sphi 0, %s399
      %s403 = sphi 0, %s402
      %s419 = sphi 0, %s403
      %s425 = sphi 0, %s427
      %s428 = sphi 0, %s425
      %s429 = sphi 0, %s428
      %s445 = sphi 0, %s429
      %s451 = sphi 0, %s453
      %s454 = sphi 0, %s451
      %s455 = sphi 0, %s454
      %s471 = sphi 0, %s455
      %s477 = sphi 0, %s479
      %s480 = sphi 0, %s477
      %s481 = sphi 0, %s480
      %s497 = sphi 0, %s481
      %s503 = sphi 0, %s505
      %s506 = sphi 0, %s503
      %s507 = sphi 0, %s506
      %s523 = sphi 0, %s507
      %s529 = sphi 0, %s531
      %s532 = sphi 0, %s529
      %s533 = sphi 0, %s532
      %s549 = sphi 0, %s533
      %s555 = sphi 0, %s557
      %s558 = sphi 0, %s555
      %s559 = sphi 0, %s558
      %s575 = sphi 0, %s559
      %s581 = sphi 0, %s583
      %s584 = sphi 0, %s581
      %s585 = sphi 0, %s584
      %s601 = sphi 0, %s585
      %s607 = sphi 0, %s609
      %s610 = sphi 0, %s607
      %s611 = sphi 0, %s610
      %s627 = sphi 0, %s611
      %s633 = sphi 0, %s635
      %s636 = sphi 0, %s633
      %s637 = sphi 0, %s636
      %s653 = sphi 0, %s637
      %s659 = sphi 0, %s661
      %s662 = sphi 0, %s659
      %s663 = sphi 0, %s662
      %s679 = sphi 0, %s663
      %s685 = sphi 0, %s687
      %s688 = sphi 0, %s685
      %s689 = sphi 0, %s688
      %s705 = sphi 0, %s689
      %s713 = sphi 0, %s715
      %s716 = sphi 0, %s713
      %s717 = sphi 0, %s716
      %s733 = sphi 0, %s717
      %s741 = sphi 0, %s743
      %s744 = sphi 0, %s741
      %s745 = sphi 0, %s744
      %s761 = sphi 0, %s745
    $region4: #{tpu_custom_call.1} parent=1 // loop_header_branch
      %42 = sbr.rel (%p40) target = $region8
    $region5: #{tpu_custom_call.1} parent=1 // loop_body
      %s44 = ssub.s32 %s39, 1
      %s45 = ssub.s32 %s39, 2
      %s52 = sadd.s32 1, %s47
      %p53 = scmp.ge.s32.totalorder %s52, 2
      %s54 = scalar_select %p53, 0, %s52
      %s55 = sadd.s32 1, %s46
      %s56 = scalar_select %p53, %s55, %s46
      %p57 = scmp.ge.s32.totalorder %s56, 2
      %s58 = scalar_select %p57, 0, %s56
      %s59 = ssub.s32 %s46, %s58
      %p60 = scmp.eq.s32.totalorder %s59, 0
      %s62 = sadd.s32 %s61, 1
      %s63 = scalar_select %p60, %s61, %s62
      %p66 = pneg %p60
      %p67 = scmp.eq.s32.totalorder %s39, 3
      %p68 = por %p66, %p67
      %p69 = scmp.ne.s32.totalorder %s61, %s64
      %p70 = scmp.eq.s32.totalorder %s39, 0
      %p71 = por %p69, %p70
      %p72 = scmp.ne.s32.totalorder %s61, %s64
      %p73 = scmp.eq.s32.totalorder %s44, 3
      %p74 = por %p72, %p73
      %p75 = scmp.ne.s32.totalorder %s64, %s65
      %p76 = scmp.eq.s32.totalorder %s44, 0
      %p77 = por %p75, %p76
      %p78 = scmp.ne.s32.totalorder %s64, %s65
      %p79 = scmp.eq.s32.totalorder %s45, 3
      %p80 = por %p78, %p79
      %p82 = scmp.ne.s32.totalorder %s65, %s81
      %p83 = scmp.eq.s32.totalorder %s45, 0
      %p84 = por %p82, %p83
      %s85 = ssub.s32 %s46, %s58
      %p86 = scmp.eq.s32.totalorder %s85, 0
      %s88 = sadd.s32 %s87, 1
      %s89 = scalar_select %p86, %s87, %s88
      %p92 = pneg %p86
      %p93 = scmp.eq.s32.totalorder %s39, 3
      %p94 = por %p92, %p93
      %p95 = scmp.ne.s32.totalorder %s87, %s90
      %p96 = scmp.eq.s32.totalorder %s39, 0
      %p97 = por %p95, %p96
      %p98 = scmp.ne.s32.totalorder %s87, %s90
      %p99 = scmp.eq.s32.totalorder %s44, 3
      %p100 = por %p98, %p99
      %p101 = scmp.ne.s32.totalorder %s90, %s91
      %p102 = scmp.eq.s32.totalorder %s44, 0
      %p103 = por %p101, %p102
      %p104 = scmp.ne.s32.totalorder %s90, %s91
      %p105 = scmp.eq.s32.totalorder %s45, 3
      %p106 = por %p104, %p105
      %p108 = scmp.ne.s32.totalorder %s91, %s107
      %p109 = scmp.eq.s32.totalorder %s45, 0
      %p110 = por %p108, %p109
      %s111 = ssub.s32 %s47, %s54
      %p112 = scmp.eq.s32.totalorder %s111, 0
      %s114 = sadd.s32 %s113, 1
      %s115 = scalar_select %p112, %s113, %s114
      %p118 = pneg %p112
      %p119 = scmp.eq.s32.totalorder %s39, 3
      %p120 = por %p118, %p119
      %p121 = scmp.ne.s32.totalorder %s113, %s116
      %p122 = scmp.eq.s32.totalorder %s39, 0
      %p123 = por %p121, %p122
      %p124 = scmp.ne.s32.totalorder %s113, %s116
      %p125 = scmp.eq.s32.totalorder %s44, 3
      %p126 = por %p124, %p125
      %p127 = scmp.ne.s32.totalorder %s116, %s117
      %p128 = scmp.eq.s32.totalorder %s44, 0
      %p129 = por %p127, %p128
      %p130 = scmp.ne.s32.totalorder %s116, %s117
      %p131 = scmp.eq.s32.totalorder %s45, 3
      %p132 = por %p130, %p131
      %p134 = scmp.ne.s32.totalorder %s117, %s133
      %p135 = scmp.eq.s32.totalorder %s45, 0
      %p136 = por %p134, %p135
      %s137 = ssub.s32 %s47, %s54
      %p138 = scmp.eq.s32.totalorder %s137, 0
      %s140 = sadd.s32 %s139, 1
      %s141 = scalar_select %p138, %s139, %s140
      %p144 = pneg %p138
      %p145 = scmp.eq.s32.totalorder %s39, 3
      %p146 = por %p144, %p145
      %p147 = scmp.ne.s32.totalorder %s139, %s142
      %p148 = scmp.eq.s32.totalorder %s39, 0
      %p149 = por %p147, %p148
      %p150 = scmp.ne.s32.totalorder %s139, %s142
      %p151 = scmp.eq.s32.totalorder %s44, 3
      %p152 = por %p150, %p151
      %p153 = scmp.ne.s32.totalorder %s142, %s143
      %p154 = scmp.eq.s32.totalorder %s44, 0
      %p155 = por %p153, %p154
      %p156 = scmp.ne.s32.totalorder %s142, %s143
      %p157 = scmp.eq.s32.totalorder %s45, 3
      %p158 = por %p156, %p157
      %p160 = scmp.ne.s32.totalorder %s143, %s159
      %p161 = scmp.eq.s32.totalorder %s45, 0
      %p162 = por %p160, %p161
      %s163 = ssub.s32 %s47, %s54
      %p164 = scmp.eq.s32.totalorder %s163, 0
      %s166 = sadd.s32 %s165, 1
      %s167 = scalar_select %p164, %s165, %s166
      %p170 = pneg %p164
      %p171 = scmp.eq.s32.totalorder %s39, 3
      %p172 = por %p170, %p171
      %p173 = scmp.ne.s32.totalorder %s165, %s168
      %p174 = scmp.eq.s32.totalorder %s39, 0
      %p175 = por %p173, %p174
      %p176 = scmp.ne.s32.totalorder %s165, %s168
      %p177 = scmp.eq.s32.totalorder %s44, 3
      %p178 = por %p176, %p177
      %p179 = scmp.ne.s32.totalorder %s168, %s169
      %p180 = scmp.eq.s32.totalorder %s44, 0
      %p181 = por %p179, %p180
      %p182 = scmp.ne.s32.totalorder %s168, %s169
      %p183 = scmp.eq.s32.totalorder %s45, 3
      %p184 = por %p182, %p183
      %p186 = scmp.ne.s32.totalorder %s169, %s185
      %p187 = scmp.eq.s32.totalorder %s45, 0
      %p188 = por %p186, %p187
      %s189 = ssub.s32 %s47, %s54
      %p190 = scmp.eq.s32.totalorder %s189, 0
      %s192 = sadd.s32 %s191, 1
      %s193 = scalar_select %p190, %s191, %s192
      %p196 = pneg %p190
      %p197 = scmp.eq.s32.totalorder %s39, 3
      %p198 = por %p196, %p197
      %p199 = scmp.ne.s32.totalorder %s191, %s194
      %p200 = scmp.eq.s32.totalorder %s39, 0
      %p201 = por %p199, %p200
      %p202 = scmp.ne.s32.totalorder %s191, %s194
      %p203 = scmp.eq.s32.totalorder %s44, 3
      %p204 = por %p202, %p203
      %p205 = scmp.ne.s32.totalorder %s194, %s195
      %p206 = scmp.eq.s32.totalorder %s44, 0
      %p207 = por %p205, %p206
      %p208 = scmp.ne.s32.totalorder %s194, %s195
      %p209 = scmp.eq.s32.totalorder %s45, 3
      %p210 = por %p208, %p209
      %p212 = scmp.ne.s32.totalorder %s195, %s211
      %p213 = scmp.eq.s32.totalorder %s45, 0
      %p214 = por %p212, %p213
      %s215 = ssub.s32 %s47, %s54
      %p216 = scmp.eq.s32.totalorder %s215, 0
      %s218 = sadd.s32 %s217, 1
      %s219 = scalar_select %p216, %s217, %s218
      %p222 = pneg %p216
      %p223 = scmp.eq.s32.totalorder %s39, 3
      %p224 = por %p222, %p223
      %p225 = scmp.ne.s32.totalorder %s217, %s220
      %p226 = scmp.eq.s32.totalorder %s39, 0
      %p227 = por %p225, %p226
      %p228 = scmp.ne.s32.totalorder %s217, %s220
      %p229 = scmp.eq.s32.totalorder %s44, 3
      %p230 = por %p228, %p229
      %p231 = scmp.ne.s32.totalorder %s220, %s221
      %p232 = scmp.eq.s32.totalorder %s44, 0
      %p233 = por %p231, %p232
      %p234 = scmp.ne.s32.totalorder %s220, %s221
      %p235 = scmp.eq.s32.totalorder %s45, 3
      %p236 = por %p234, %p235
      %p238 = scmp.ne.s32.totalorder %s221, %s237
      %p239 = scmp.eq.s32.totalorder %s45, 0
      %p240 = por %p238, %p239
      %s241 = ssub.s32 %s47, %s54
      %p242 = scmp.eq.s32.totalorder %s241, 0
      %s244 = sadd.s32 %s243, 1
      %s245 = scalar_select %p242, %s243, %s244
      %p248 = pneg %p242
      %p249 = scmp.eq.s32.totalorder %s39, 3
      %p250 = por %p248, %p249
      %p251 = scmp.ne.s32.totalorder %s243, %s246
      %p252 = scmp.eq.s32.totalorder %s39, 0
      %p253 = por %p251, %p252
      %p254 = scmp.ne.s32.totalorder %s243, %s246
      %p255 = scmp.eq.s32.totalorder %s44, 3
      %p256 = por %p254, %p255
      %p257 = scmp.ne.s32.totalorder %s246, %s247
      %p258 = scmp.eq.s32.totalorder %s44, 0
      %p259 = por %p257, %p258
      %p260 = scmp.ne.s32.totalorder %s246, %s247
      %p261 = scmp.eq.s32.totalorder %s45, 3
      %p262 = por %p260, %p261
      %p264 = scmp.ne.s32.totalorder %s247, %s263
      %p265 = scmp.eq.s32.totalorder %s45, 0
      %p266 = por %p264, %p265
      %s267 = ssub.s32 %s47, %s54
      %p268 = scmp.eq.s32.totalorder %s267, 0
      %s270 = sadd.s32 %s269, 1
      %s271 = scalar_select %p268, %s269, %s270
      %p274 = pneg %p268
      %p275 = scmp.eq.s32.totalorder %s39, 3
      %p276 = por %p274, %p275
      %p277 = scmp.ne.s32.totalorder %s269, %s272
      %p278 = scmp.eq.s32.totalorder %s39, 0
      %p279 = por %p277, %p278
      %p280 = scmp.ne.s32.totalorder %s269, %s272
      %p281 = scmp.eq.s32.totalorder %s44, 3
      %p282 = por %p280, %p281
      %p283 = scmp.ne.s32.totalorder %s272, %s273
      %p284 = scmp.eq.s32.totalorder %s44, 0
      %p285 = por %p283, %p284
      %p286 = scmp.ne.s32.totalorder %s272, %s273
      %p287 = scmp.eq.s32.totalorder %s45, 3
      %p288 = por %p286, %p287
      %p290 = scmp.ne.s32.totalorder %s273, %s289
      %p291 = scmp.eq.s32.totalorder %s45, 0
      %p292 = por %p290, %p291
      %s293 = ssub.s32 %s47, %s54
      %p294 = scmp.eq.s32.totalorder %s293, 0
      %s296 = sadd.s32 %s295, 1
      %s297 = scalar_select %p294, %s295, %s296
      %p300 = pneg %p294
      %p301 = scmp.eq.s32.totalorder %s39, 3
      %p302 = por %p300, %p301
      %p303 = scmp.ne.s32.totalorder %s295, %s298
      %p304 = scmp.eq.s32.totalorder %s39, 0
      %p305 = por %p303, %p304
      %p306 = scmp.ne.s32.totalorder %s295, %s298
      %p307 = scmp.eq.s32.totalorder %s44, 3
      %p308 = por %p306, %p307
      %p309 = scmp.ne.s32.totalorder %s298, %s299
      %p310 = scmp.eq.s32.totalorder %s44, 0
      %p311 = por %p309, %p310
      %p312 = scmp.ne.s32.totalorder %s298, %s299
      %p313 = scmp.eq.s32.totalorder %s45, 3
      %p314 = por %p312, %p313
      %p316 = scmp.ne.s32.totalorder %s299, %s315
      %p317 = scmp.eq.s32.totalorder %s45, 0
      %p318 = por %p316, %p317
      %s319 = ssub.s32 %s47, %s54
      %p320 = scmp.eq.s32.totalorder %s319, 0
      %s322 = sadd.s32 %s321, 1
      %s323 = scalar_select %p320, %s321, %s322
      %p326 = pneg %p320
      %p327 = scmp.eq.s32.totalorder %s39, 3
      %p328 = por %p326, %p327
      %p329 = scmp.ne.s32.totalorder %s321, %s324
      %p330 = scmp.eq.s32.totalorder %s39, 0
      %p331 = por %p329, %p330
      %p332 = scmp.ne.s32.totalorder %s321, %s324
      %p333 = scmp.eq.s32.totalorder %s44, 3
      %p334 = por %p332, %p333
      %p335 = scmp.ne.s32.totalorder %s324, %s325
      %p336 = scmp.eq.s32.totalorder %s44, 0
      %p337 = por %p335, %p336
      %p338 = scmp.ne.s32.totalorder %s324, %s325
      %p339 = scmp.eq.s32.totalorder %s45, 3
      %p340 = por %p338, %p339
      %p342 = scmp.ne.s32.totalorder %s325, %s341
      %p343 = scmp.eq.s32.totalorder %s45, 0
      %p344 = por %p342, %p343
      %s345 = ssub.s32 %s47, %s54
      %p346 = scmp.eq.s32.totalorder %s345, 0
      %s348 = sadd.s32 %s347, 1
      %s349 = scalar_select %p346, %s347, %s348
      %p352 = pneg %p346
      %p353 = scmp.eq.s32.totalorder %s39, 3
      %p354 = por %p352, %p353
      %p355 = scmp.ne.s32.totalorder %s347, %s350
      %p356 = scmp.eq.s32.totalorder %s39, 0
      %p357 = por %p355, %p356
      %p358 = scmp.ne.s32.totalorder %s347, %s350
      %p359 = scmp.eq.s32.totalorder %s44, 3
      %p360 = por %p358, %p359
      %p361 = scmp.ne.s32.totalorder %s350, %s351
      %p362 = scmp.eq.s32.totalorder %s44, 0
      %p363 = por %p361, %p362
      %p364 = scmp.ne.s32.totalorder %s350, %s351
      %p365 = scmp.eq.s32.totalorder %s45, 3
      %p366 = por %p364, %p365
      %p368 = scmp.ne.s32.totalorder %s351, %s367
      %p369 = scmp.eq.s32.totalorder %s45, 0
      %p370 = por %p368, %p369
      %s371 = ssub.s32 %s47, %s54
      %p372 = scmp.eq.s32.totalorder %s371, 0
      %s374 = sadd.s32 %s373, 1
      %s375 = scalar_select %p372, %s373, %s374
      %p378 = pneg %p372
      %p379 = scmp.eq.s32.totalorder %s39, 3
      %p380 = por %p378, %p379
      %p381 = scmp.ne.s32.totalorder %s373, %s376
      %p382 = scmp.eq.s32.totalorder %s39, 0
      %p383 = por %p381, %p382
      %p384 = scmp.ne.s32.totalorder %s373, %s376
      %p385 = scmp.eq.s32.totalorder %s44, 3
      %p386 = por %p384, %p385
      %p387 = scmp.ne.s32.totalorder %s376, %s377
      %p388 = scmp.eq.s32.totalorder %s44, 0
      %p389 = por %p387, %p388
      %p390 = scmp.ne.s32.totalorder %s376, %s377
      %p391 = scmp.eq.s32.totalorder %s45, 3
      %p392 = por %p390, %p391
      %p394 = scmp.ne.s32.totalorder %s377, %s393
      %p395 = scmp.eq.s32.totalorder %s45, 0
      %p396 = por %p394, %p395
      %s397 = ssub.s32 %s47, %s54
      %p398 = scmp.eq.s32.totalorder %s397, 0
      %s400 = sadd.s32 %s399, 1
      %s401 = scalar_select %p398, %s399, %s400
      %p404 = pneg %p398
      %p405 = scmp.eq.s32.totalorder %s39, 3
      %p406 = por %p404, %p405
      %p407 = scmp.ne.s32.totalorder %s399, %s402
      %p408 = scmp.eq.s32.totalorder %s39, 0
      %p409 = por %p407, %p408
      %p410 = scmp.ne.s32.totalorder %s399, %s402
      %p411 = scmp.eq.s32.totalorder %s44, 3
      %p412 = por %p410, %p411
      %p413 = scmp.ne.s32.totalorder %s402, %s403
      %p414 = scmp.eq.s32.totalorder %s44, 0
      %p415 = por %p413, %p414
      %p416 = scmp.ne.s32.totalorder %s402, %s403
      %p417 = scmp.eq.s32.totalorder %s45, 3
      %p418 = por %p416, %p417
      %p420 = scmp.ne.s32.totalorder %s403, %s419
      %p421 = scmp.eq.s32.totalorder %s45, 0
      %p422 = por %p420, %p421
      %s423 = ssub.s32 %s47, %s54
      %p424 = scmp.eq.s32.totalorder %s423, 0
      %s426 = sadd.s32 %s425, 1
      %s427 = scalar_select %p424, %s425, %s426
      %p430 = pneg %p424
      %p431 = scmp.eq.s32.totalorder %s39, 3
      %p432 = por %p430, %p431
      %p433 = scmp.ne.s32.totalorder %s425, %s428
      %p434 = scmp.eq.s32.totalorder %s39, 0
      %p435 = por %p433, %p434
      %p436 = scmp.ne.s32.totalorder %s425, %s428
      %p437 = scmp.eq.s32.totalorder %s44, 3
      %p438 = por %p436, %p437
      %p439 = scmp.ne.s32.totalorder %s428, %s429
      %p440 = scmp.eq.s32.totalorder %s44, 0
      %p441 = por %p439, %p440
      %p442 = scmp.ne.s32.totalorder %s428, %s429
      %p443 = scmp.eq.s32.totalorder %s45, 3
      %p444 = por %p442, %p443
      %p446 = scmp.ne.s32.totalorder %s429, %s445
      %p447 = scmp.eq.s32.totalorder %s45, 0
      %p448 = por %p446, %p447
      %s449 = ssub.s32 %s47, %s54
      %p450 = scmp.eq.s32.totalorder %s449, 0
      %s452 = sadd.s32 %s451, 1
      %s453 = scalar_select %p450, %s451, %s452
      %p456 = pneg %p450
      %p457 = scmp.eq.s32.totalorder %s39, 3
      %p458 = por %p456, %p457
      %p459 = scmp.ne.s32.totalorder %s451, %s454
      %p460 = scmp.eq.s32.totalorder %s39, 0
      %p461 = por %p459, %p460
      %p462 = scmp.ne.s32.totalorder %s451, %s454
      %p463 = scmp.eq.s32.totalorder %s44, 3
      %p464 = por %p462, %p463
      %p465 = scmp.ne.s32.totalorder %s454, %s455
      %p466 = scmp.eq.s32.totalorder %s44, 0
      %p467 = por %p465, %p466
      %p468 = scmp.ne.s32.totalorder %s454, %s455
      %p469 = scmp.eq.s32.totalorder %s45, 3
      %p470 = por %p468, %p469
      %p472 = scmp.ne.s32.totalorder %s455, %s471
      %p473 = scmp.eq.s32.totalorder %s45, 0
      %p474 = por %p472, %p473
      %s475 = ssub.s32 %s47, %s54
      %p476 = scmp.eq.s32.totalorder %s475, 0
      %s478 = sadd.s32 %s477, 1
      %s479 = scalar_select %p476, %s477, %s478
      %p482 = pneg %p476
      %p483 = scmp.eq.s32.totalorder %s39, 3
      %p484 = por %p482, %p483
      %p485 = scmp.ne.s32.totalorder %s477, %s480
      %p486 = scmp.eq.s32.totalorder %s39, 0
      %p487 = por %p485, %p486
      %p488 = scmp.ne.s32.totalorder %s477, %s480
      %p489 = scmp.eq.s32.totalorder %s44, 3
      %p490 = por %p488, %p489
      %p491 = scmp.ne.s32.totalorder %s480, %s481
      %p492 = scmp.eq.s32.totalorder %s44, 0
      %p493 = por %p491, %p492
      %p494 = scmp.ne.s32.totalorder %s480, %s481
      %p495 = scmp.eq.s32.totalorder %s45, 3
      %p496 = por %p494, %p495
      %p498 = scmp.ne.s32.totalorder %s481, %s497
      %p499 = scmp.eq.s32.totalorder %s45, 0
      %p500 = por %p498, %p499
      %s501 = ssub.s32 %s47, %s54
      %p502 = scmp.eq.s32.totalorder %s501, 0
      %s504 = sadd.s32 %s503, 1
      %s505 = scalar_select %p502, %s503, %s504
      %p508 = pneg %p502
      %p509 = scmp.eq.s32.totalorder %s39, 3
      %p510 = por %p508, %p509
      %p511 = scmp.ne.s32.totalorder %s503, %s506
      %p512 = scmp.eq.s32.totalorder %s39, 0
      %p513 = por %p511, %p512
      %p514 = scmp.ne.s32.totalorder %s503, %s506
      %p515 = scmp.eq.s32.totalorder %s44, 3
      %p516 = por %p514, %p515
      %p517 = scmp.ne.s32.totalorder %s506, %s507
      %p518 = scmp.eq.s32.totalorder %s44, 0
      %p519 = por %p517, %p518
      %p520 = scmp.ne.s32.totalorder %s506, %s507
      %p521 = scmp.eq.s32.totalorder %s45, 3
      %p522 = por %p520, %p521
      %p524 = scmp.ne.s32.totalorder %s507, %s523
      %p525 = scmp.eq.s32.totalorder %s45, 0
      %p526 = por %p524, %p525
      %s527 = ssub.s32 %s47, %s54
      %p528 = scmp.eq.s32.totalorder %s527, 0
      %s530 = sadd.s32 %s529, 1
      %s531 = scalar_select %p528, %s529, %s530
      %p534 = pneg %p528
      %p535 = scmp.eq.s32.totalorder %s39, 3
      %p536 = por %p534, %p535
      %p537 = scmp.ne.s32.totalorder %s529, %s532
      %p538 = scmp.eq.s32.totalorder %s39, 0
      %p539 = por %p537, %p538
      %p540 = scmp.ne.s32.totalorder %s529, %s532
      %p541 = scmp.eq.s32.totalorder %s44, 3
      %p542 = por %p540, %p541
      %p543 = scmp.ne.s32.totalorder %s532, %s533
      %p544 = scmp.eq.s32.totalorder %s44, 0
      %p545 = por %p543, %p544
      %p546 = scmp.ne.s32.totalorder %s532, %s533
      %p547 = scmp.eq.s32.totalorder %s45, 3
      %p548 = por %p546, %p547
      %p550 = scmp.ne.s32.totalorder %s533, %s549
      %p551 = scmp.eq.s32.totalorder %s45, 0
      %p552 = por %p550, %p551
      %s553 = ssub.s32 %s47, %s54
      %p554 = scmp.eq.s32.totalorder %s553, 0
      %s556 = sadd.s32 %s555, 1
      %s557 = scalar_select %p554, %s555, %s556
      %p560 = pneg %p554
      %p561 = scmp.eq.s32.totalorder %s39, 3
      %p562 = por %p560, %p561
      %p563 = scmp.ne.s32.totalorder %s555, %s558
      %p564 = scmp.eq.s32.totalorder %s39, 0
      %p565 = por %p563, %p564
      %p566 = scmp.ne.s32.totalorder %s555, %s558
      %p567 = scmp.eq.s32.totalorder %s44, 3
      %p568 = por %p566, %p567
      %p569 = scmp.ne.s32.totalorder %s558, %s559
      %p570 = scmp.eq.s32.totalorder %s44, 0
      %p571 = por %p569, %p570
      %p572 = scmp.ne.s32.totalorder %s558, %s559
      %p573 = scmp.eq.s32.totalorder %s45, 3
      %p574 = por %p572, %p573
      %p576 = scmp.ne.s32.totalorder %s559, %s575
      %p577 = scmp.eq.s32.totalorder %s45, 0
      %p578 = por %p576, %p577
      %s579 = ssub.s32 %s47, %s54
      %p580 = scmp.eq.s32.totalorder %s579, 0
      %s582 = sadd.s32 %s581, 1
      %s583 = scalar_select %p580, %s581, %s582
      %p586 = pneg %p580
      %p587 = scmp.eq.s32.totalorder %s39, 3
      %p588 = por %p586, %p587
      %p589 = scmp.ne.s32.totalorder %s581, %s584
      %p590 = scmp.eq.s32.totalorder %s39, 0
      %p591 = por %p589, %p590
      %p592 = scmp.ne.s32.totalorder %s581, %s584
      %p593 = scmp.eq.s32.totalorder %s44, 3
      %p594 = por %p592, %p593
      %p595 = scmp.ne.s32.totalorder %s584, %s585
      %p596 = scmp.eq.s32.totalorder %s44, 0
      %p597 = por %p595, %p596
      %p598 = scmp.ne.s32.totalorder %s584, %s585
      %p599 = scmp.eq.s32.totalorder %s45, 3
      %p600 = por %p598, %p599
      %p602 = scmp.ne.s32.totalorder %s585, %s601
      %p603 = scmp.eq.s32.totalorder %s45, 0
      %p604 = por %p602, %p603
      %s605 = ssub.s32 %s47, %s54
      %p606 = scmp.eq.s32.totalorder %s605, 0
      %s608 = sadd.s32 %s607, 1
      %s609 = scalar_select %p606, %s607, %s608
      %p612 = pneg %p606
      %p613 = scmp.eq.s32.totalorder %s39, 3
      %p614 = por %p612, %p613
      %p615 = scmp.ne.s32.totalorder %s607, %s610
      %p616 = scmp.eq.s32.totalorder %s39, 0
      %p617 = por %p615, %p616
      %p618 = scmp.ne.s32.totalorder %s607, %s610
      %p619 = scmp.eq.s32.totalorder %s44, 3
      %p620 = por %p618, %p619
      %p621 = scmp.ne.s32.totalorder %s610, %s611
      %p622 = scmp.eq.s32.totalorder %s44, 0
      %p623 = por %p621, %p622
      %p624 = scmp.ne.s32.totalorder %s610, %s611
      %p625 = scmp.eq.s32.totalorder %s45, 3
      %p626 = por %p624, %p625
      %p628 = scmp.ne.s32.totalorder %s611, %s627
      %p629 = scmp.eq.s32.totalorder %s45, 0
      %p630 = por %p628, %p629
      %s631 = ssub.s32 %s47, %s54
      %p632 = scmp.eq.s32.totalorder %s631, 0
      %s634 = sadd.s32 %s633, 1
      %s635 = scalar_select %p632, %s633, %s634
      %p638 = pneg %p632
      %p639 = scmp.eq.s32.totalorder %s39, 3
      %p640 = por %p638, %p639
      %p641 = scmp.ne.s32.totalorder %s633, %s636
      %p642 = scmp.eq.s32.totalorder %s39, 0
      %p643 = por %p641, %p642
      %p644 = scmp.ne.s32.totalorder %s633, %s636
      %p645 = scmp.eq.s32.totalorder %s44, 3
      %p646 = por %p644, %p645
      %p647 = scmp.ne.s32.totalorder %s636, %s637
      %p648 = scmp.eq.s32.totalorder %s44, 0
      %p649 = por %p647, %p648
      %p650 = scmp.ne.s32.totalorder %s636, %s637
      %p651 = scmp.eq.s32.totalorder %s45, 3
      %p652 = por %p650, %p651
      %p654 = scmp.ne.s32.totalorder %s637, %s653
      %p655 = scmp.eq.s32.totalorder %s45, 0
      %p656 = por %p654, %p655
      %s657 = ssub.s32 %s47, %s54
      %p658 = scmp.eq.s32.totalorder %s657, 0
      %s660 = sadd.s32 %s659, 1
      %s661 = scalar_select %p658, %s659, %s660
      %p664 = pneg %p658
      %p665 = scmp.eq.s32.totalorder %s39, 3
      %p666 = por %p664, %p665
      %p667 = scmp.ne.s32.totalorder %s659, %s662
      %p668 = scmp.eq.s32.totalorder %s39, 0
      %p669 = por %p667, %p668
      %p670 = scmp.ne.s32.totalorder %s659, %s662
      %p671 = scmp.eq.s32.totalorder %s44, 3
      %p672 = por %p670, %p671
      %p673 = scmp.ne.s32.totalorder %s662, %s663
      %p674 = scmp.eq.s32.totalorder %s44, 0
      %p675 = por %p673, %p674
      %p676 = scmp.ne.s32.totalorder %s662, %s663
      %p677 = scmp.eq.s32.totalorder %s45, 3
      %p678 = por %p676, %p677
      %p680 = scmp.ne.s32.totalorder %s663, %s679
      %p681 = scmp.eq.s32.totalorder %s45, 0
      %p682 = por %p680, %p681
      %s683 = ssub.s32 %s46, %s58
      %p684 = scmp.eq.s32.totalorder %s683, 0
      %s686 = sadd.s32 %s685, 1
      %s687 = scalar_select %p684, %s685, %s686
      %p690 = pneg %p684
      %p691 = scmp.eq.s32.totalorder %s39, 3
      %p692 = por %p690, %p691
      %p693 = scmp.ne.s32.totalorder %s685, %s688
      %p694 = scmp.eq.s32.totalorder %s39, 0
      %p695 = por %p693, %p694
      %p696 = scmp.ne.s32.totalorder %s685, %s688
      %p697 = scmp.eq.s32.totalorder %s44, 3
      %p698 = por %p696, %p697
      %p699 = scmp.ne.s32.totalorder %s688, %s689
      %p700 = scmp.eq.s32.totalorder %s44, 0
      %p701 = por %p699, %p700
      %p702 = scmp.ne.s32.totalorder %s688, %s689
      %p703 = scmp.eq.s32.totalorder %s45, 3
      %p704 = por %p702, %p703
      %p706 = scmp.ne.s32.totalorder %s689, %s705
      %p707 = scmp.eq.s32.totalorder %s45, 0
      %p708 = por %p706, %p707
      %s709 = ssub.s32 %s47, %s54
      %s710 = ssub.s32 %s46, %s58
      %s711 = sor.u32 %s709, %s710
      %p712 = scmp.eq.s32.totalorder %s711, 0
      %s714 = sadd.s32 %s713, 1
      %s715 = scalar_select %p712, %s713, %s714
      %p718 = pneg %p712
      %p719 = scmp.eq.s32.totalorder %s39, 3
      %p720 = por %p718, %p719
      %p721 = scmp.ne.s32.totalorder %s713, %s716
      %p722 = scmp.eq.s32.totalorder %s39, 0
      %p723 = por %p721, %p722
      %p724 = scmp.ne.s32.totalorder %s713, %s716
      %p725 = scmp.eq.s32.totalorder %s44, 3
      %p726 = por %p724, %p725
      %p727 = scmp.ne.s32.totalorder %s716, %s717
      %p728 = scmp.eq.s32.totalorder %s44, 0
      %p729 = por %p727, %p728
      %p730 = scmp.ne.s32.totalorder %s716, %s717
      %p731 = scmp.eq.s32.totalorder %s45, 3
      %p732 = por %p730, %p731
      %p734 = scmp.ne.s32.totalorder %s717, %s733
      %p735 = scmp.eq.s32.totalorder %s45, 0
      %p736 = por %p734, %p735
      %s737 = ssub.s32 %s47, %s54
      %s738 = ssub.s32 %s46, %s58
      %s739 = sor.u32 %s737, %s738
      %p740 = scmp.eq.s32.totalorder %s739, 0
      %s742 = sadd.s32 %s741, 1
      %s743 = scalar_select %p740, %s741, %s742
      %p746 = pneg %p740
      %p747 = scmp.eq.s32.totalorder %s39, 3
      %p748 = por %p746, %p747
      %p749 = scmp.ne.s32.totalorder %s741, %s744
      %p750 = scmp.eq.s32.totalorder %s39, 0
      %p751 = por %p749, %p750
      %p752 = scmp.ne.s32.totalorder %s741, %s744
      %p753 = scmp.eq.s32.totalorder %s44, 3
      %p754 = por %p752, %p753
      %p755 = scmp.ne.s32.totalorder %s744, %s745
      %p756 = scmp.eq.s32.totalorder %s44, 0
      %p757 = por %p755, %p756
      %p758 = scmp.ne.s32.totalorder %s744, %s745
      %p759 = scmp.eq.s32.totalorder %s45, 3
      %p760 = por %p758, %p759
      %p762 = scmp.ne.s32.totalorder %s745, %s761
      %p763 = scmp.eq.s32.totalorder %s45, 0
      %p764 = por %p762, %p763
      %p765 = scmp.le.s32.totalorder 1, %s39
      %p766 = scmp.lt.s32.totalorder %s39, 5
      %p767 = pnand %p765, %p766
      %p768 = pneg %p767
      // Predicated region
      $region9: #{tpu_custom_call.1} parent=5 // pred_check
        _
      $region10: #{tpu_custom_call.1} parent=5 // pred_check_branch
        %770 = sbr.rel (%p767) target = $region12
      $region11: #{tpu_custom_call.1} parent=5 // pred_region
        %s771 = ssub.s32 %s39, 1
      $region12: #{tpu_custom_call.1} parent=5 // pred_fallthru
        _
      %p772 = scmp.lt.s32.totalorder %s39, 4
      // Predicated region
      $region13: #{tpu_custom_call.1} parent=5 // pred_check
        %p773 = pneg %p772
      $region14: #{tpu_custom_call.1} parent=5 // pred_check_branch
        %775 = sbr.rel (%p773) target = $region16
      $region15: #{tpu_custom_call.1} parent=5 // pred_region
        // Predicated region
        $region17: #{tpu_custom_call.1} parent=15 // pred_check
          %p776 = pneg %p71
        $region18: #{tpu_custom_call.1} parent=15 // pred_check_branch
          %778 = sbr.rel (%p776) target = $region20
        $region19: #{tpu_custom_call.1} parent=15 // pred_region
          %p779 = scmp.lt.s32.totalorder %s46, 1
          %s780 = scalar_select %p779, %s46, 1
          %s781 = smul.addr %s780, 8
          %s782 = scalar_lea.vmem %s0, %s781
        $region20: #{tpu_custom_call.1} parent=15 // pred_fallthru
          _
        // Predicated region
        $region21: #{tpu_custom_call.1} parent=15 // pred_check
          %p783 = pneg %p97
        $region22: #{tpu_custom_call.1} parent=15 // pred_check_branch
          %785 = sbr.rel (%p783) target = $region24
        $region23: #{tpu_custom_call.1} parent=15 // pred_region
          %p786 = scmp.lt.s32.totalorder %s46, 1
          %s787 = scalar_select %p786, %s46, 1
          %s788 = smul.addr %s787, 8
          %s789 = scalar_lea.vmem %s1, %s788
        $region24: #{tpu_custom_call.1} parent=15 // pred_fallthru
          _
        // Predicated region
        $region25: #{tpu_custom_call.1} parent=15 // pred_check
          %p790 = pneg %p123
        $region26: #{tpu_custom_call.1} parent=15 // pred_check_branch
          %792 = sbr.rel (%p790) target = $region28
        $region27: #{tpu_custom_call.1} parent=15 // pred_region
          %p793 = scmp.lt.s32.totalorder %s47, 1
          %s794 = scalar_select %p793, %s47, 1
          %s795 = scalar_lea.vmem %s2, %s794
        $region28: #{tpu_custom_call.1} parent=15 // pred_fallthru
          _
        // Predicated region
        $region29: #{tpu_custom_call.1} parent=15 // pred_check
          %p796 = pneg %p149
        $region30: #{tpu_custom_call.1} parent=15 // pred_check_branch
          %798 = sbr.rel (%p796) target = $region32
        $region31: #{tpu_custom_call.1} parent=15 // pred_region
          %p799 = scmp.lt.s32.totalorder %s47, 1
          %s800 = scalar_select %p799, %s47, 1
          %s801 = scalar_lea.vmem %s3, %s800
        $region32: #{tpu_custom_call.1} parent=15 // pred_fallthru
          _
        // Predicated region
        $region33: #{tpu_custom_call.1} parent=15 // pred_check
          %p802 = pneg %p175
        $region34: #{tpu_custom_call.1} parent=15 // pred_check_branch
          %804 = sbr.rel (%p802) target = $region36
        $region35: #{tpu_custom_call.1} parent=15 // pred_region
          %p805 = scmp.lt.s32.totalorder %s47, 1
          %s806 = scalar_select %p805, %s47, 1
          %s807 = scalar_lea.vmem %s4, %s806
        $region36: #{tpu_custom_call.1} parent=15 // pred_fallthru
          _
        // Predicated region
        $region37: #{tpu_custom_call.1} parent=15 // pred_check
          %p808 = pneg %p201
        $region38: #{tpu_custom_call.1} parent=15 // pred_check_branch
          %810 = sbr.rel (%p808) target = $region40
        $region39: #{tpu_custom_call.1} parent=15 // pred_region
          %p811 = scmp.lt.s32.totalorder %s47, 1
          %s812 = scalar_select %p811, %s47, 1
          %s813 = scalar_lea.vmem %s5, %s812
        $region40: #{tpu_custom_call.1} parent=15 // pred_fallthru
          _
        // Predicated region
        $region41: #{tpu_custom_call.1} parent=15 // pred_check
          %p814 = pneg %p227
        $region42: #{tpu_custom_call.1} parent=15 // pred_check_branch
          %816 = sbr.rel (%p814) target = $region44
        $region43: #{tpu_custom_call.1} parent=15 // pred_region
          %p817 = scmp.lt.s32.totalorder %s47, 1
          %s818 = scalar_select %p817, %s47, 1
          %s819 = smul.addr %s818, 4
          %s820 = smul.addr %s819, 4
          %s821 = scalar_lea.vmem %s6, %s820
        $region44: #{tpu_custom_call.1} parent=15 // pred_fallthru
          _
        // Predicated region
        $region45: #{tpu_custom_call.1} parent=15 // pred_check
          %p822 = pneg %p253
        $region46: #{tpu_custom_call.1} parent=15 // pred_check_branch
          %824 = sbr.rel (%p822) target = $region48
        $region47: #{tpu_custom_call.1} parent=15 // pred_region
          %p825 = scmp.lt.s32.totalorder %s47, 1
          %s826 = scalar_select %p825, %s47, 1
          %s827 = scalar_lea.vmem %s7, %s826
        $region48: #{tpu_custom_call.1} parent=15 // pred_fallthru
          _
        // Predicated region
        $region49: #{tpu_custom_call.1} parent=15 // pred_check
          %p828 = pneg %p279
        $region50: #{tpu_custom_call.1} parent=15 // pred_check_branch
          %830 = sbr.rel (%p828) target = $region52
        $region51: #{tpu_custom_call.1} parent=15 // pred_region
          %p831 = scmp.lt.s32.totalorder %s47, 1
          %s832 = scalar_select %p831, %s47, 1
          %s833 = smul.addr %s832, 4
          %s834 = smul.addr %s833, 4
          %s835 = scalar_lea.vmem %s8, %s834
        $region52: #{tpu_custom_call.1} parent=15 // pred_fallthru
          _
        // Predicated region
        $region53: #{tpu_custom_call.1} parent=15 // pred_check
          %p836 = pneg %p305
        $region54: #{tpu_custom_call.1} parent=15 // pred_check_branch
          %838 = sbr.rel (%p836) target = $region56
        $region55: #{tpu_custom_call.1} parent=15 // pred_region
          %p839 = scmp.lt.s32.totalorder %s47, 1
          %s840 = scalar_select %p839, %s47, 1
          %s841 = scalar_lea.vmem %s9, %s840
        $region56: #{tpu_custom_call.1} parent=15 // pred_fallthru
          _
        // Predicated region
        $region57: #{tpu_custom_call.1} parent=15 // pred_check
          %p842 = pneg %p331
        $region58: #{tpu_custom_call.1} parent=15 // pred_check_branch
          %844 = sbr.rel (%p842) target = $region60
        $region59: #{tpu_custom_call.1} parent=15 // pred_region
          %p845 = scmp.lt.s32.totalorder %s47, 1
          %s846 = scalar_select %p845, %s47, 1
          %s847 = smul.addr %s846, 4
          %s848 = smul.addr %s847, 4
          %s849 = scalar_lea.vmem %s10, %s848
        $region60: #{tpu_custom_call.1} parent=15 // pred_fallthru
          _
        // Predicated region
        $region61: #{tpu_custom_call.1} parent=15 // pred_check
          %p850 = pneg %p357
        $region62: #{tpu_custom_call.1} parent=15 // pred_check_branch
          %852 = sbr.rel (%p850) target = $region64
        $region63: #{tpu_custom_call.1} parent=15 // pred_region
          %p853 = scmp.lt.s32.totalorder %s47, 1
          %s854 = scalar_select %p853, %s47, 1
          %s855 = smul.addr %s854, 2
          %s856 = smul.addr %s855, 4
          %s857 = scalar_lea.vmem %s11, %s856
        $region64: #{tpu_custom_call.1} parent=15 // pred_fallthru
          _
        // Predicated region
        $region65: #{tpu_custom_call.1} parent=15 // pred_check
          %p858 = pneg %p383
        $region66: #{tpu_custom_call.1} parent=15 // pred_check_branch
          %860 = sbr.rel (%p858) target = $region68
        $region67: #{tpu_custom_call.1} parent=15 // pred_region
          %p861 = scmp.lt.s32.totalorder %s47, 1
          %s862 = scalar_select %p861, %s47, 1
          %s863 = scalar_lea.vmem %s12, %s862
        $region68: #{tpu_custom_call.1} parent=15 // pred_fallthru
          _
        // Predicated region
        $region69: #{tpu_custom_call.1} parent=15 // pred_check
          %p864 = pneg %p409
        $region70: #{tpu_custom_call.1} parent=15 // pred_check_branch
          %866 = sbr.rel (%p864) target = $region72
        $region71: #{tpu_custom_call.1} parent=15 // pred_region
          %p867 = scmp.lt.s32.totalorder %s47, 1
          %s868 = scalar_select %p867, %s47, 1
          %s869 = smul.addr %s868, 4
          %s870 = scalar_lea.vmem %s13, %s869
        $region72: #{tpu_custom_call.1} parent=15 // pred_fallthru
          _
        // Predicated region
        $region73: #{tpu_custom_call.1} parent=15 // pred_check
          %p871 = pneg %p435
        $region74: #{tpu_custom_call.1} parent=15 // pred_check_branch
          %873 = sbr.rel (%p871) target = $region76
        $region75: #{tpu_custom_call.1} parent=15 // pred_region
          %p874 = scmp.lt.s32.totalorder %s47, 1
          %s875 = scalar_select %p874, %s47, 1
          %s876 = scalar_lea.vmem %s14, %s875
        $region76: #{tpu_custom_call.1} parent=15 // pred_fallthru
          _
        // Predicated region
        $region77: #{tpu_custom_call.1} parent=15 // pred_check
          %p877 = pneg %p461
        $region78: #{tpu_custom_call.1} parent=15 // pred_check_branch
          %879 = sbr.rel (%p877) target = $region80
        $region79: #{tpu_custom_call.1} parent=15 // pred_region
          %p880 = scmp.lt.s32.totalorder %s47, 1
          %s881 = scalar_select %p880, %s47, 1
          %s882 = smul.addr %s881, 4
          %s883 = smul.addr %s882, 4
          %s884 = scalar_lea.vmem %s15, %s883
        $region80: #{tpu_custom_call.1} parent=15 // pred_fallthru
          _
        // Predicated region
        $region81: #{tpu_custom_call.1} parent=15 // pred_check
          %p885 = pneg %p487
        $region82: #{tpu_custom_call.1} parent=15 // pred_check_branch
          %887 = sbr.rel (%p885) target = $region84
        $region83: #{tpu_custom_call.1} parent=15 // pred_region
          %p888 = scmp.lt.s32.totalorder %s47, 1
          %s889 = scalar_select %p888, %s47, 1
          %s890 = scalar_lea.vmem %s16, %s889
        $region84: #{tpu_custom_call.1} parent=15 // pred_fallthru
          _
        // Predicated region
        $region85: #{tpu_custom_call.1} parent=15 // pred_check
          %p891 = pneg %p513
        $region86: #{tpu_custom_call.1} parent=15 // pred_check_branch
          %893 = sbr.rel (%p891) target = $region88
        $region87: #{tpu_custom_call.1} parent=15 // pred_region
          %p894 = scmp.lt.s32.totalorder %s47, 1
          %s895 = scalar_select %p894, %s47, 1
          %s896 = smul.addr %s895, 8
          %s897 = smul.addr %s896, 4
          %s898 = scalar_lea.vmem %s17, %s897
        $region88: #{tpu_custom_call.1} parent=15 // pred_fallthru
          _
        // Predicated region
        $region89: #{tpu_custom_call.1} parent=15 // pred_check
          %p899 = pneg %p539
        $region90: #{tpu_custom_call.1} parent=15 // pred_check_branch
          %901 = sbr.rel (%p899) target = $region92
        $region91: #{tpu_custom_call.1} parent=15 // pred_region
          %p902 = scmp.lt.s32.totalorder %s47, 1
          %s903 = scalar_select %p902, %s47, 1
          %s904 = scalar_lea.vmem %s18, %s903
        $region92: #{tpu_custom_call.1} parent=15 // pred_fallthru
          _
        // Predicated region
        $region93: #{tpu_custom_call.1} parent=15 // pred_check
          %p905 = pneg %p565
        $region94: #{tpu_custom_call.1} parent=15 // pred_check_branch
          %907 = sbr.rel (%p905) target = $region96
        $region95: #{tpu_custom_call.1} parent=15 // pred_region
          %p908 = scmp.lt.s32.totalorder %s47, 1
          %s909 = scalar_select %p908, %s47, 1
          %s910 = smul.addr %s909, 4
          %s911 = smul.addr %s910, 4
          %s912 = scalar_lea.vmem %s19, %s911
        $region96: #{tpu_custom_call.1} parent=15 // pred_fallthru
          _
        // Predicated region
        $region97: #{tpu_custom_call.1} parent=15 // pred_check
          %p913 = pneg %p591
        $region98: #{tpu_custom_call.1} parent=15 // pred_check_branch
          %915 = sbr.rel (%p913) target = $region100
        $region99: #{tpu_custom_call.1} parent=15 // pred_region
          %p916 = scmp.lt.s32.totalorder %s47, 1
          %s917 = scalar_select %p916, %s47, 1
          %s918 = smul.addr %s917, 2
          %s919 = smul.addr %s918, 4
          %s920 = scalar_lea.vmem %s20, %s919
        $region100: #{tpu_custom_call.1} parent=15 // pred_fallthru
          _
        // Predicated region
        $region101: #{tpu_custom_call.1} parent=15 // pred_check
          %p921 = pneg %p617
        $region102: #{tpu_custom_call.1} parent=15 // pred_check_branch
          %923 = sbr.rel (%p921) target = $region104
        $region103: #{tpu_custom_call.1} parent=15 // pred_region
          %p924 = scmp.lt.s32.totalorder %s47, 1
          %s925 = scalar_select %p924, %s47, 1
          %s926 = scalar_lea.vmem %s21, %s925
        $region104: #{tpu_custom_call.1} parent=15 // pred_fallthru
          _
        // Predicated region
        $region105: #{tpu_custom_call.1} parent=15 // pred_check
          %p927 = pneg %p643
        $region106: #{tpu_custom_call.1} parent=15 // pred_check_branch
          %929 = sbr.rel (%p927) target = $region108
        $region107: #{tpu_custom_call.1} parent=15 // pred_region
          %p930 = scmp.lt.s32.totalorder %s47, 1
          %s931 = scalar_select %p930, %s47, 1
          %s932 = smul.addr %s931, 4
          %s933 = scalar_lea.vmem %s22, %s932
        $region108: #{tpu_custom_call.1} parent=15 // pred_fallthru
          _
        // Predicated region
        $region109: #{tpu_custom_call.1} parent=15 // pred_check
          %p934 = pneg %p669
        $region110: #{tpu_custom_call.1} parent=15 // pred_check_branch
          %936 = sbr.rel (%p934) target = $region112
        $region111: #{tpu_custom_call.1} parent=15 // pred_region
          %p937 = scmp.lt.s32.totalorder %s47, 1
          %s938 = scalar_select %p937, %s47, 1
          %s939 = scalar_lea.vmem %s23, %s938
        $region112: #{tpu_custom_call.1} parent=15 // pred_fallthru
          _
      $region16: #{tpu_custom_call.1} parent=5 // pred_fallthru
        _
      %p940 = scmp.le.s32.totalorder 1, %s39
      %p941 = scmp.lt.s32.totalorder %s39, 5
      %p942 = pnand %p940, %p941
      %p943 = pneg %p942
      // Predicated region
      $region113: #{tpu_custom_call.1} parent=5 // pred_check
        _
      $region114: #{tpu_custom_call.1} parent=5 // pred_check_branch
        %945 = sbr.rel (%p942) target = $region116
      $region115: #{tpu_custom_call.1} parent=5 // pred_region
        %s946 = ssub.s32 %s39, 1
        %p947 = scmp.lt.s32.totalorder %s48, 1
        %s948 = scalar_select %p947, %s48, 1
        %s949 = smul.addr %s948, 8
        %s950 = scalar_lea.vmem %s0, %s949
        %p951 = pneg %p77
        %p952 = pneg %p74
        %p953 = scmp.lt.s32.totalorder %s48, 1
        %s954 = scalar_select %p953, %s48, 1
        %s955 = smul.addr %s954, 8
        %s956 = scalar_lea.vmem %s1, %s955
        %p957 = pneg %p103
        %p958 = pneg %p100
        %p959 = scmp.lt.s32.totalorder %s49, 1
        %s960 = scalar_select %p959, %s49, 1
        %s961 = scalar_lea.vmem %s2, %s960
        %p962 = pneg %p129
        %p963 = pneg %p126
        %p964 = scmp.lt.s32.totalorder %s49, 1
        %s965 = scalar_select %p964, %s49, 1
        %s966 = scalar_lea.vmem %s3, %s965
        %p967 = pneg %p155
        %p968 = pneg %p152
        %p969 = scmp.lt.s32.totalorder %s49, 1
        %s970 = scalar_select %p969, %s49, 1
        %s971 = scalar_lea.vmem %s4, %s970
        %p972 = pneg %p181
        %p973 = pneg %p178
        %p974 = scmp.lt.s32.totalorder %s49, 1
        %s975 = scalar_select %p974, %s49, 1
        %s976 = scalar_lea.vmem %s5, %s975
        %p977 = pneg %p207
        %p978 = pneg %p204
        %p979 = scmp.lt.s32.totalorder %s49, 1
        %s980 = scalar_select %p979, %s49, 1
        %s981 = smul.addr %s980, 4
        %s982 = smul.addr %s981, 4
        %s983 = scalar_lea.vmem %s6, %s982
        %p984 = pneg %p233
        %p985 = pneg %p230
        %p986 = scmp.lt.s32.totalorder %s49, 1
        %s987 = scalar_select %p986, %s49, 1
        %s988 = scalar_lea.vmem %s7, %s987
        %p989 = pneg %p259
        %p990 = pneg %p256
        %p991 = scmp.lt.s32.totalorder %s49, 1
        %s992 = scalar_select %p991, %s49, 1
        %s993 = smul.addr %s992, 4
        %s994 = smul.addr %s993, 4
        %s995 = scalar_lea.vmem %s8, %s994
        %p996 = pneg %p285
        %p997 = pneg %p282
        %p998 = scmp.lt.s32.totalorder %s49, 1
        %s999 = scalar_select %p998, %s49, 1
        %s1000 = scalar_lea.vmem %s9, %s999
        %p1001 = pneg %p311
        %p1002 = pneg %p308
        %p1003 = scmp.lt.s32.totalorder %s49, 1
        %s1004 = scalar_select %p1003, %s49, 1
        %s1005 = smul.addr %s1004, 4
        %s1006 = smul.addr %s1005, 4
        %s1007 = scalar_lea.vmem %s10, %s1006
        %p1008 = pneg %p337
        %p1009 = pneg %p334
        %p1010 = scmp.lt.s32.totalorder %s49, 1
        %s1011 = scalar_select %p1010, %s49, 1
        %s1012 = smul.addr %s1011, 2
        %s1013 = smul.addr %s1012, 4
        %s1014 = scalar_lea.vmem %s11, %s1013
        %p1015 = pneg %p363
        %p1016 = pneg %p360
        %p1017 = scmp.lt.s32.totalorder %s49, 1
        %s1018 = scalar_select %p1017, %s49, 1
        %s1019 = scalar_lea.vmem %s12, %s1018
        %p1020 = pneg %p389
        %p1021 = pneg %p386
        %p1022 = scmp.lt.s32.totalorder %s49, 1
        %s1023 = scalar_select %p1022, %s49, 1
        %s1024 = smul.addr %s1023, 4
        %s1025 = scalar_lea.vmem %s13, %s1024
        %p1026 = pneg %p415
        %p1027 = pneg %p412
        %p1028 = scmp.lt.s32.totalorder %s49, 1
        %s1029 = scalar_select %p1028, %s49, 1
        %s1030 = scalar_lea.vmem %s14, %s1029
        %p1031 = pneg %p441
        %p1032 = pneg %p438
        %p1033 = scmp.lt.s32.totalorder %s49, 1
        %s1034 = scalar_select %p1033, %s49, 1
        %s1035 = smul.addr %s1034, 4
        %s1036 = smul.addr %s1035, 4
        %s1037 = scalar_lea.vmem %s15, %s1036
        %p1038 = pneg %p467
        %p1039 = pneg %p464
        %p1040 = scmp.lt.s32.totalorder %s49, 1
        %s1041 = scalar_select %p1040, %s49, 1
        %s1042 = scalar_lea.vmem %s16, %s1041
        %p1043 = pneg %p493
        %p1044 = pneg %p490
        %p1045 = scmp.lt.s32.totalorder %s49, 1
        %s1046 = scalar_select %p1045, %s49, 1
        %s1047 = smul.addr %s1046, 8
        %s1048 = smul.addr %s1047, 4
        %s1049 = scalar_lea.vmem %s17, %s1048
        %p1050 = pneg %p519
        %p1051 = pneg %p516
        %p1052 = scmp.lt.s32.totalorder %s49, 1
        %s1053 = scalar_select %p1052, %s49, 1
        %s1054 = scalar_lea.vmem %s18, %s1053
        %p1055 = pneg %p545
        %p1056 = pneg %p542
        %p1057 = scmp.lt.s32.totalorder %s49, 1
        %s1058 = scalar_select %p1057, %s49, 1
        %s1059 = smul.addr %s1058, 4
        %s1060 = smul.addr %s1059, 4
        %s1061 = scalar_lea.vmem %s19, %s1060
        %p1062 = pneg %p571
        %p1063 = pneg %p568
        %p1064 = scmp.lt.s32.totalorder %s49, 1
        %s1065 = scalar_select %p1064, %s49, 1
        %s1066 = smul.addr %s1065, 2
        %s1067 = smul.addr %s1066, 4
        %s1068 = scalar_lea.vmem %s20, %s1067
        %p1069 = pneg %p597
        %p1070 = pneg %p594
        %p1071 = scmp.lt.s32.totalorder %s49, 1
        %s1072 = scalar_select %p1071, %s49, 1
        %s1073 = scalar_lea.vmem %s21, %s1072
        %p1074 = pneg %p623
        %p1075 = pneg %p620
        %p1076 = scmp.lt.s32.totalorder %s49, 1
        %s1077 = scalar_select %p1076, %s49, 1
        %s1078 = smul.addr %s1077, 4
        %s1079 = scalar_lea.vmem %s22, %s1078
        %p1080 = pneg %p649
        %p1081 = pneg %p646
        %p1082 = scmp.lt.s32.totalorder %s49, 1
        %s1083 = scalar_select %p1082, %s49, 1
        %s1084 = scalar_lea.vmem %s23, %s1083
        %p1085 = pneg %p675
        %p1086 = pneg %p672
        %p1087 = pneg %p701
        %p1088 = pneg %p698
        %s1089 = sand.u32 %s688, 1
        %s1090 = scalar_lea.sflag [#allocation4], %s1089
        %s1091 = sand.u32 %s688, 1
        %s1092 = smul.addr %s1091, 8
        %s1093 = scalar_lea.vmem [#allocation3], %s1092
        %p1094 = pneg %p729
        %p1095 = pneg %p726
        %s1096 = sand.u32 %s44, 1
        %s1097 = scalar_lea.sflag [#allocation6], %s1096
        %s1098 = sand.u32 %s716, 1
        %s1099 = smul.addr %s1098, 4
        %s1100 = scalar_lea.vmem [#allocation5], %s1099
        %p1101 = pneg %p757
        %p1102 = pneg %p754
        %s1103 = sand.u32 %s44, 1
        %s1104 = scalar_lea.sflag [#allocation6], %s1103
        %s1105 = sand.u32 %s744, 1
        %s1106 = smul.addr %s1105, 4
        %s1107 = scalar_lea.vmem [#allocation7], %s1106
        %p1108 = scmp.lt.s32.totalorder %s48, 1
        %s1109 = scalar_select %p1108, %s48, 1
        %s1110 = smul.addr %s1109, 8
        %s1111 = scalar_lea.vmem %s0, %s1110
        %p1112 = scmp.lt.s32.totalorder %s48, 1
        %s1113 = scalar_select %p1112, %s48, 1
        %s1114 = smul.addr %s1113, 8
        %s1115 = scalar_lea.vmem %s1, %s1114
        %p1116 = scmp.lt.s32.totalorder %s49, 1
        %s1117 = scalar_select %p1116, %s49, 1
        %s1118 = scalar_lea.vmem %s2, %s1117
        %p1119 = scmp.lt.s32.totalorder %s49, 1
        %s1120 = scalar_select %p1119, %s49, 1
        %s1121 = scalar_lea.vmem %s3, %s1120
        %p1122 = scmp.lt.s32.totalorder %s49, 1
        %s1123 = scalar_select %p1122, %s49, 1
        %s1124 = scalar_lea.vmem %s4, %s1123
        %p1125 = scmp.lt.s32.totalorder %s49, 1
        %s1126 = scalar_select %p1125, %s49, 1
        %s1127 = scalar_lea.vmem %s5, %s1126
        %p1128 = scmp.lt.s32.totalorder %s49, 1
        %s1129 = scalar_select %p1128, %s49, 1
        %s1130 = smul.addr %s1129, 4
        %s1131 = smul.addr %s1130, 4
        %s1132 = scalar_lea.vmem %s6, %s1131
        %p1133 = scmp.lt.s32.totalorder %s49, 1
        %s1134 = scalar_select %p1133, %s49, 1
        %s1135 = scalar_lea.vmem %s7, %s1134
        %p1136 = scmp.lt.s32.totalorder %s49, 1
        %s1137 = scalar_select %p1136, %s49, 1
        %s1138 = smul.addr %s1137, 4
        %s1139 = smul.addr %s1138, 4
        %s1140 = scalar_lea.vmem %s8, %s1139
        %p1141 = scmp.lt.s32.totalorder %s49, 1
        %s1142 = scalar_select %p1141, %s49, 1
        %s1143 = scalar_lea.vmem %s9, %s1142
        %p1144 = scmp.lt.s32.totalorder %s49, 1
        %s1145 = scalar_select %p1144, %s49, 1
        %s1146 = smul.addr %s1145, 4
        %s1147 = smul.addr %s1146, 4
        %s1148 = scalar_lea.vmem %s10, %s1147
        %p1149 = scmp.lt.s32.totalorder %s49, 1
        %s1150 = scalar_select %p1149, %s49, 1
        %s1151 = smul.addr %s1150, 2
        %s1152 = smul.addr %s1151, 4
        %s1153 = scalar_lea.vmem %s11, %s1152
        %p1154 = scmp.lt.s32.totalorder %s49, 1
        %s1155 = scalar_select %p1154, %s49, 1
        %s1156 = scalar_lea.vmem %s12, %s1155
        %p1157 = scmp.lt.s32.totalorder %s49, 1
        %s1158 = scalar_select %p1157, %s49, 1
        %s1159 = smul.addr %s1158, 4
        %s1160 = scalar_lea.vmem %s13, %s1159
        %p1161 = scmp.lt.s32.totalorder %s49, 1
        %s1162 = scalar_select %p1161, %s49, 1
        %s1163 = scalar_lea.vmem %s14, %s1162
        %p1164 = scmp.lt.s32.totalorder %s49, 1
        %s1165 = scalar_select %p1164, %s49, 1
        %s1166 = smul.addr %s1165, 4
        %s1167 = smul.addr %s1166, 4
        %s1168 = scalar_lea.vmem %s15, %s1167
        %p1169 = scmp.lt.s32.totalorder %s49, 1
        %s1170 = scalar_select %p1169, %s49, 1
        %s1171 = scalar_lea.vmem %s16, %s1170
        %p1172 = scmp.lt.s32.totalorder %s49, 1
        %s1173 = scalar_select %p1172, %s49, 1
        %s1174 = smul.addr %s1173, 8
        %s1175 = smul.addr %s1174, 4
        %s1176 = scalar_lea.vmem %s17, %s1175
        %p1177 = scmp.lt.s32.totalorder %s49, 1
        %s1178 = scalar_select %p1177, %s49, 1
        %s1179 = scalar_lea.vmem %s18, %s1178
        %p1180 = scmp.lt.s32.totalorder %s49, 1
        %s1181 = scalar_select %p1180, %s49, 1
        %s1182 = smul.addr %s1181, 4
        %s1183 = smul.addr %s1182, 4
        %s1184 = scalar_lea.vmem %s19, %s1183
        %p1185 = scmp.lt.s32.totalorder %s49, 1
        %s1186 = scalar_select %p1185, %s49, 1
        %s1187 = smul.addr %s1186, 2
        %s1188 = smul.addr %s1187, 4
        %s1189 = scalar_lea.vmem %s20, %s1188
        %p1190 = scmp.lt.s32.totalorder %s49, 1
        %s1191 = scalar_select %p1190, %s49, 1
        %s1192 = scalar_lea.vmem %s21, %s1191
        %p1193 = scmp.lt.s32.totalorder %s49, 1
        %s1194 = scalar_select %p1193, %s49, 1
        %s1195 = smul.addr %s1194, 4
        %s1196 = scalar_lea.vmem %s22, %s1195
        %p1197 = scmp.lt.s32.totalorder %s49, 1
        %s1198 = scalar_select %p1197, %s49, 1
        %s1199 = scalar_lea.vmem %s23, %s1198
        %p1201 = scmp.eq.s32.totalorder %s49, 0
        // Predicated region
        $region117: #{tpu_custom_call.1} parent=115 // pred_check
          %p1202 = pneg %p1201
        $region118: #{tpu_custom_call.1} parent=115 // pred_check_branch
          %1204 = sbr.rel (%p1202) target = $region120
        $region119: #{tpu_custom_call.1} parent=115 // pred_region
          %v1205 = vld [vmem:[%s1111] sm:$0xff]
          %vm1206 = vcmask 261120
          %1207 = vst.msk [vmem:[#allocation2] sm:$0xff] %vm1206, %v1205
        $region120: #{tpu_custom_call.1} parent=115 // pred_fallthru
          _
        %v1208 = vld [vmem:[#allocation2] sm:$0xff]
        %v1209 = vld [vmem:[%s1115] sm:$0xff]
        %v1210 = vpack.c.bf16 %v1209, %v1209
        %v1211 = vld [vmem:[%s1118] sm:$0x1]
        %v1212 = vld [vmem:[%s1121] sm:$0x1]
        %vm1213 = vcmask 261120
        %v1214 = vsel %vm1213, %v1208, 0.0
        %1215 = vadd.xlane.f32.xlu0 %v1214
        %v1216 = vpop.xlane.xlu0 %1215
        %v1217 = vrcp.pop 32.0
        %v1218 = vmul.f32 32.0, %v1217
        %v1219 = vsub.f32 1.0, %v1218
        %v1220 = vmul.f32 %v1217, %v1219
        %v1221 = vadd.f32 %v1217, %v1220
        %vm1222 = vweird.f32 %v1217
        %v1223 = vsel %vm1222, %v1217, %v1221
        %v1224 = vmul.f32 %v1216, %v1223
        %v1225 = vsub.f32 %v1208, %v1224
        %v1226 = vmul.f32 %v1225, %v1225
        %v1227 = vsel %vm1213, %v1226, 0.0
        %1228 = vadd.xlane.f32.xlu0 %v1227
        %v1229 = vpop.xlane.xlu0 %1228
        %v1230 = vmul.f32 %v1229, %v1223
        %v1231 = vadd.f32 %v1230, 1e-05
        %v1232 = vrsqrt.pop %v1231
        %v1233 = vmul.f32 %v1232, %v1231
        %v1234 = vmul.f32 %v1233, %v1232
        %v1235 = vmul.f32 0.5, %v1234
        %v1236 = vsub.f32 1.5, %v1235
        %v1237 = vmul.f32 %v1232, %v1236
        %vm1238 = vweird.f32 %v1231
        %vm1239 = vweird.f32 %v1232
        %vm1240 = vmor %vm1238, %vm1239
        %v1241 = vsel %vm1240, %v1232, %v1237
        %v1242 = vmul.f32 %v1225, %v1241
        %v1244 = vperm.slane %v1211, 0
        %v1246 = vmul.f32 %v1242, %v1244
        %v1248 = vperm.slane %v1212, 0
        %v1250 = vadd.f32 %v1246, %v1248
        %v1251 = vld [vmem:[%s1124] sm:$0x1]
        %v1252 = vld [vmem:[%s1127] sm:$0x1]
        %v1253 = vsel %vm1213, %v1250, 0.0
        %1254 = vadd.xlane.f32.xlu0 %v1253
        %v1255 = vpop.xlane.xlu0 %1254
        %v1256 = vmul.f32 %v1255, %v1223
        %v1257 = vsub.f32 %v1250, %v1256
        %v1258 = vmul.f32 %v1257, %v1257
        %v1259 = vsel %vm1213, %v1258, 0.0
        %1260 = vadd.xlane.f32.xlu0 %v1259
        %v1261 = vpop.xlane.xlu0 %1260
        %v1262 = vmul.f32 %v1261, %v1223
        %v1263 = vadd.f32 %v1262, 1e-05
        %v1264 = vrsqrt.pop %v1263
        %v1265 = vmul.f32 %v1264, %v1263
        %v1266 = vmul.f32 %v1265, %v1264
        %v1267 = vmul.f32 0.5, %v1266
        %v1268 = vsub.f32 1.5, %v1267
        %v1269 = vmul.f32 %v1264, %v1268
        %vm1270 = vweird.f32 %v1263
        %vm1271 = vweird.f32 %v1264
        %vm1272 = vmor %vm1270, %vm1271
        %v1273 = vsel %vm1272, %v1264, %v1269
        %v1274 = vmul.f32 %v1257, %v1273
        %v1276 = vperm.slane %v1251, 0
        %v1278 = vmul.f32 %v1274, %v1276
        %v1280 = vperm.slane %v1252, 0
        %v1282 = vadd.f32 %v1278, %v1280
        %v1283 = vpack.c.bf16 %v1282, %v1282
        %v1284 = vld [vmem:[%s1132] sm:$0xf]
        %v1285 = vld [vmem:[%s1132 + $0x4] sm:$0xf]
        %v1286 = vld [vmem:[%s1132 + $0x8] sm:$0xf]
        %v1287 = vld [vmem:[%s1132 + $0xc] sm:$0xf]
        %v1288 = vld [vmem:[%s1135] sm:$0x1]
        %v1290 = vperm.slane %v1288, 0
        %v1296 = vunpack.c.l.b16 %v1284
        %v1297 = vunpack.c.l.b16 %v1285
        %v1298 = vunpack.c.l.b16 %v1286
        %v1299 = vunpack.c.l.b16 %v1287
        %v1300 = vpack.c.b16 %v1297, %v1296
        %v1301 = vpack.c.b16 %v1299, %v1298
        %v1305 = vsel %vm1213, %v1283, 0
        %1307 = vmatpush.bf16.msra.mxu0 0
        %1308 = vmatpush.bf16.msra.mxu0 0
        %1309 = vmatpush.bf16.msra.mxu0 0
        %1310 = vmatpush.bf16.msra.mxu0 0
        %1311 = vmatpush.bf16.msra.mxu0 0
        %1312 = vmatpush.bf16.msra.mxu0 0
        %1313 = vmatpush.bf16.msra.mxu0 %v1301
        %1314 = vmatpush.bf16.msra.mxu0 %v1300
        %1315 = vmatmul.bf16.gmra.mxu0 %v1305
        %v1316 = vpop.f32.mrf.mxu0
        %v1317 = vadd.f32 %v1290, %v1316
        %v1318 = vpop.f32.mrf.mxu0
        %1319 = vdwg.mxu0
        %v1320 = vmul.f32 %v1317, 0.35355338
        %1322 = vrot.lane.b32.xlu0 %v1320, 120
        %v1323 = vpop.permute.xlu0 %1322
        %1325 = vrot.lane.b32.xlu0 %v1320, 112
        %v1326 = vpop.permute.xlu0 %1325
        %1328 = vrot.lane.b32.xlu0 %v1320, 104
        %v1329 = vpop.permute.xlu0 %1328
        %v1331 = vpack.c.bf16 %v1320, %v1320
        %v1332 = vpack.c.bf16 %v1323, %v1323
        %v1333 = vpack.c.bf16 %v1326, %v1326
        %v1334 = vpack.c.bf16 %v1329, %v1329
        %1336 = vrot.lane.b32.xlu0 %v1317, 120
        %v1337 = vpop.permute.xlu0 %1336
        %1339 = vrot.lane.b32.xlu0 %v1317, 112
        %v1340 = vpop.permute.xlu0 %1339
        %1342 = vrot.lane.b32.xlu0 %v1317, 104
        %v1343 = vpop.permute.xlu0 %1342
        %v1345 = vpack.c.bf16 %v1317, %v1317
        %v1346 = vpack.c.bf16 %v1337, %v1337
        %v1347 = vpack.c.bf16 %v1340, %v1340
        %v1348 = vpack.c.bf16 %v1343, %v1343
        %v1350 = vunpack.c.l.b16 %v1345
        %v1351 = vpack.c.b16 %v1350, %v1350
        %1352 = vrot.lane.b32.xlu0 %v1351, 96
        %v1353 = vpop.permute.xlu0 %1352
        %vm1354 = vcmask 64512
        %v1356 = vsel %vm1354, %v1331, 0
        %v1359 = vsel %vm1354, %v1353, 0
        %1361 = vmatpush.bf16.xpose.msra.mxu0 0
        %1362 = vmatpush.bf16.xpose.msra.mxu0 0
        %1363 = vmatpush.bf16.xpose.msra.mxu0 0
        %1364 = vmatpush.bf16.xpose.msra.mxu0 0
        %1365 = vmatpush.bf16.xpose.msra.mxu0 0
        %1366 = vmatpush.bf16.xpose.msra.mxu0 0
        %1367 = vmatpush.bf16.xpose.msra.mxu0 0
        %1368 = vmatpush.bf16.xpose.msra.mxu0 %v1359
        %1369 = vmatmul.bf16.gmra.mxu0 %v1356
        %v1370 = vpop.f32.mrf.mxu0
        %v1371 = vadd.f32 0.0, %v1370
        %v1372 = vpop.f32.mrf.mxu0
        %1373 = vdwg.mxu0
        %v1375 = vunpack.c.l.b16 %v1346
        %v1376 = vpack.c.b16 %v1375, %v1375
        %1377 = vrot.lane.b32.xlu0 %v1376, 96
        %v1378 = vpop.permute.xlu0 %1377
        %v1380 = vsel %vm1354, %v1332, 0
        %v1383 = vsel %vm1354, %v1378, 0
        %1385 = vmatpush.bf16.xpose.msra.mxu0 0
        %1386 = vmatpush.bf16.xpose.msra.mxu0 0
        %1387 = vmatpush.bf16.xpose.msra.mxu0 0
        %1388 = vmatpush.bf16.xpose.msra.mxu0 0
        %1389 = vmatpush.bf16.xpose.msra.mxu0 0
        %1390 = vmatpush.bf16.xpose.msra.mxu0 0
        %1391 = vmatpush.bf16.xpose.msra.mxu0 0
        %1392 = vmatpush.bf16.xpose.msra.mxu0 %v1383
        %1393 = vmatmul.bf16.gmra.mxu0 %v1380
        %v1394 = vpop.f32.mrf.mxu0
        %v1395 = vadd.f32 0.0, %v1394
        %v1396 = vpop.f32.mrf.mxu0
        %1397 = vdwg.mxu0
        %v1399 = vunpack.c.l.b16 %v1347
        %v1400 = vpack.c.b16 %v1399, %v1399
        %1401 = vrot.lane.b32.xlu0 %v1400, 96
        %v1402 = vpop.permute.xlu0 %1401
        %v1404 = vsel %vm1354, %v1333, 0
        %v1407 = vsel %vm1354, %v1402, 0
        %1409 = vmatpush.bf16.xpose.msra.mxu0 0
        %1410 = vmatpush.bf16.xpose.msra.mxu0 0
        %1411 = vmatpush.bf16.xpose.msra.mxu0 0
        %1412 = vmatpush.bf16.xpose.msra.mxu0 0
        %1413 = vmatpush.bf16.xpose.msra.mxu0 0
        %1414 = vmatpush.bf16.xpose.msra.mxu0 0
        %1415 = vmatpush.bf16.xpose.msra.mxu0 0
        %1416 = vmatpush.bf16.xpose.msra.mxu0 %v1407
        %1417 = vmatmul.bf16.gmra.mxu0 %v1404
        %v1418 = vpop.f32.mrf.mxu0
        %v1419 = vadd.f32 0.0, %v1418
        %v1420 = vpop.f32.mrf.mxu0
        %1421 = vdwg.mxu0
        %v1423 = vunpack.c.l.b16 %v1348
        %v1424 = vpack.c.b16 %v1423, %v1423
        %1425 = vrot.lane.b32.xlu0 %v1424, 96
        %v1426 = vpop.permute.xlu0 %1425
        %v1428 = vsel %vm1354, %v1334, 0
        %v1431 = vsel %vm1354, %v1426, 0
        %1433 = vmatpush.bf16.xpose.msra.mxu0 0
        %1434 = vmatpush.bf16.xpose.msra.mxu0 0
        %1435 = vmatpush.bf16.xpose.msra.mxu0 0
        %1436 = vmatpush.bf16.xpose.msra.mxu0 0
        %1437 = vmatpush.bf16.xpose.msra.mxu0 0
        %1438 = vmatpush.bf16.xpose.msra.mxu0 0
        %1439 = vmatpush.bf16.xpose.msra.mxu0 0
        %1440 = vmatpush.bf16.xpose.msra.mxu0 %v1431
        %1441 = vmatmul.bf16.gmra.mxu0 %v1428
        %v1442 = vpop.f32.mrf.mxu0
        %v1443 = vadd.f32 0.0, %v1442
        %v1444 = vpop.f32.mrf.mxu0
        %1445 = vdwg.mxu0
        %v1446 = vlaneseq
        %v1447 = vshrl.u32 %v1446, 7
        %v1448 = vlaneseq
        %v1449 = vand.u32 %v1448, 127
        %vm1450 = vcmp.ge.s32.totalorder %v1447, %v1449
        %v1451 = vsel %vm1450, %v1371, -1e+30
        %v1452 = vsel %vm1450, %v1395, -1e+30
        %v1453 = vsel %vm1450, %v1419, -1e+30
        %v1454 = vsel %vm1450, %v1443, -1e+30
        %v1455 = vsel %vm1354, %v1451, -inf
        %1456 = vmax.xlane.f32.xlu0 %v1455
        %v1457 = vpop.xlane.xlu0 %1456
        %v1458 = vsel %vm1354, %v1452, -inf
        %1459 = vmax.xlane.f32.xlu0 %v1458
        %v1460 = vpop.xlane.xlu0 %1459
        %v1461 = vsel %vm1354, %v1453, -inf
        %1462 = vmax.xlane.f32.xlu0 %v1461
        %v1463 = vpop.xlane.xlu0 %1462
        %v1464 = vsel %vm1354, %v1454, -inf
        %1465 = vmax.xlane.f32.xlu0 %v1464
        %v1466 = vpop.xlane.xlu0 %1465
        %v1467 = vsub.f32 %v1451, %v1457
        %v1468 = vsub.f32 %v1452, %v1460
        %v1469 = vsub.f32 %v1453, %v1463
        %v1470 = vsub.f32 %v1454, %v1466
        %v1471 = vmul.f32 %v1467, 1.442695
        %v1472 = vpow.pop %v1471
        %v1473 = vmul.f32 %v1468, 1.442695
        %v1474 = vpow.pop %v1473
        %v1475 = vmul.f32 %v1469, 1.442695
        %v1476 = vpow.pop %v1475
        %v1477 = vmul.f32 %v1470, 1.442695
        %v1478 = vpow.pop %v1477
        %v1479 = vsel %vm1354, %v1472, 0.0
        %1480 = vadd.xlane.f32.xlu0 %v1479
        %v1481 = vpop.xlane.xlu0 %1480
        %v1482 = vsel %vm1354, %v1474, 0.0
        %1483 = vadd.xlane.f32.xlu0 %v1482
        %v1484 = vpop.xlane.xlu0 %1483
        %v1485 = vsel %vm1354, %v1476, 0.0
        %1486 = vadd.xlane.f32.xlu0 %v1485
        %v1487 = vpop.xlane.xlu0 %1486
        %v1488 = vsel %vm1354, %v1478, 0.0
        %1489 = vadd.xlane.f32.xlu0 %v1488
        %v1490 = vpop.xlane.xlu0 %1489
        %v1491 = vrcp.pop %v1481
        %v1492 = vrcp.pop %v1484
        %v1493 = vrcp.pop %v1487
        %v1494 = vrcp.pop %v1490
        %v1495 = vpack.c.bf16 %v1472, %v1472
        %v1496 = vpack.c.bf16 %v1474, %v1474
        %v1497 = vpack.c.bf16 %v1476, %v1476
        %v1498 = vpack.c.bf16 %v1478, %v1478
        %1499 = vrot.lane.b32.xlu0 %v1351, 64
        %v1500 = vpop.permute.xlu0 %1499
        %v1502 = vsel %vm1354, %v1495, 0
        %vm1504 = vcmask 1043456
        %v1506 = vsel %vm1504, %v1500, 0
        %1508 = vmatpush.bf16.msra.mxu0 0
        %1509 = vmatpush.bf16.msra.mxu0 0
        %1510 = vmatpush.bf16.msra.mxu0 0
        %1511 = vmatpush.bf16.msra.mxu0 0
        %1512 = vmatpush.bf16.msra.mxu0 0
        %1513 = vmatpush.bf16.msra.mxu0 0
        %1514 = vmatpush.bf16.msra.mxu0 0
        %1515 = vmatpush.bf16.msra.mxu0 %v1506
        %1516 = vmatmul.bf16.gmra.mxu0 %v1502
        %v1517 = vpop.f32.mrf.mxu0
        %v1518 = vadd.f32 0.0, %v1517
        %v1519 = vpop.f32.mrf.mxu0
        %1520 = vdwg.mxu0
        %1521 = vrot.lane.b32.xlu0 %v1376, 64
        %v1522 = vpop.permute.xlu0 %1521
        %v1524 = vsel %vm1354, %v1496, 0
        %v1527 = vsel %vm1504, %v1522, 0
        %1529 = vmatpush.bf16.msra.mxu0 0
        %1530 = vmatpush.bf16.msra.mxu0 0
        %1531 = vmatpush.bf16.msra.mxu0 0
        %1532 = vmatpush.bf16.msra.mxu0 0
        %1533 = vmatpush.bf16.msra.mxu0 0
        %1534 = vmatpush.bf16.msra.mxu0 0
        %1535 = vmatpush.bf16.msra.mxu0 0
        %1536 = vmatpush.bf16.msra.mxu0 %v1527
        %1537 = vmatmul.bf16.gmra.mxu0 %v1524
        %v1538 = vpop.f32.mrf.mxu0
        %v1539 = vadd.f32 0.0, %v1538
        %v1540 = vpop.f32.mrf.mxu0
        %1541 = vdwg.mxu0
        %1542 = vrot.lane.b32.xlu0 %v1400, 64
        %v1543 = vpop.permute.xlu0 %1542
        %v1545 = vsel %vm1354, %v1497, 0
        %v1548 = vsel %vm1504, %v1543, 0
        %1550 = vmatpush.bf16.msra.mxu0 0
        %1551 = vmatpush.bf16.msra.mxu0 0
        %1552 = vmatpush.bf16.msra.mxu0 0
        %1553 = vmatpush.bf16.msra.mxu0 0
        %1554 = vmatpush.bf16.msra.mxu0 0
        %1555 = vmatpush.bf16.msra.mxu0 0
        %1556 = vmatpush.bf16.msra.mxu0 0
        %1557 = vmatpush.bf16.msra.mxu0 %v1548
        %1558 = vmatmul.bf16.gmra.mxu0 %v1545
        %v1559 = vpop.f32.mrf.mxu0
        %v1560 = vadd.f32 0.0, %v1559
        %v1561 = vpop.f32.mrf.mxu0
        %1562 = vdwg.mxu0
        %1563 = vrot.lane.b32.xlu0 %v1424, 64
        %v1564 = vpop.permute.xlu0 %1563
        %v1566 = vsel %vm1354, %v1498, 0
        %v1569 = vsel %vm1504, %v1564, 0
        %1571 = vmatpush.bf16.msra.mxu0 0
        %1572 = vmatpush.bf16.msra.mxu0 0
        %1573 = vmatpush.bf16.msra.mxu0 0
        %1574 = vmatpush.bf16.msra.mxu0 0
        %1575 = vmatpush.bf16.msra.mxu0 0
        %1576 = vmatpush.bf16.msra.mxu0 0
        %1577 = vmatpush.bf16.msra.mxu0 0
        %1578 = vmatpush.bf16.msra.mxu0 %v1569
        %1579 = vmatmul.bf16.gmra.mxu0 %v1566
        %v1580 = vpop.f32.mrf.mxu0
        %v1581 = vadd.f32 0.0, %v1580
        %v1582 = vpop.f32.mrf.mxu0
        %1583 = vdwg.mxu0
        %v1584 = vmul.f32 %v1518, %v1491
        %v1585 = vmul.f32 %v1539, %v1492
        %v1586 = vmul.f32 %v1560, %v1493
        %v1587 = vmul.f32 %v1581, %v1494
        %1589 = vrot.lane.b32.xlu0 %v1585, 8
        %v1590 = vpop.permute.xlu0 %1589
        %1593 = vrot.lane.b32.xlu0 %v1586, 16
        %v1594 = vpop.permute.xlu0 %1593
        %1597 = vrot.lane.b32.xlu0 %v1587, 24
        %v1598 = vpop.permute.xlu0 %1597
        %v1600 = vsel %vm1354, %v1584, %v1590
        %vm1601 = vcmask 130048
        %v1602 = vsel %vm1601, %v1600, %v1594
        %vm1603 = vcmask 195584
        %v1604 = vsel %vm1603, %v1602, %v1598
        %v1605 = vpack.c.bf16 %v1604, %v1604
        %v1606 = vld [vmem:[%s1140] sm:$0xf]
        %v1607 = vld [vmem:[%s1140 + $0x4] sm:$0xf]
        %v1608 = vld [vmem:[%s1140 + $0x8] sm:$0xf]
        %v1609 = vld [vmem:[%s1140 + $0xc] sm:$0xf]
        %v1610 = vld [vmem:[%s1143] sm:$0x1]
        %v1612 = vperm.slane %v1610, 0
        %v1618 = vunpack.c.l.b16 %v1606
        %v1619 = vunpack.c.l.b16 %v1607
        %v1620 = vunpack.c.l.b16 %v1608
        %v1621 = vunpack.c.l.b16 %v1609
        %v1622 = vpack.c.b16 %v1619, %v1618
        %v1623 = vpack.c.b16 %v1621, %v1620
        %v1627 = vsel %vm1213, %v1605, 0
        %1629 = vmatpush.bf16.msra.mxu0 0
        %1630 = vmatpush.bf16.msra.mxu0 0
        %1631 = vmatpush.bf16.msra.mxu0 0
        %1632 = vmatpush.bf16.msra.mxu0 0
        %1633 = vmatpush.bf16.msra.mxu0 0
        %1634 = vmatpush.bf16.msra.mxu0 0
        %1635 = vmatpush.bf16.msra.mxu0 %v1623
        %1636 = vmatpush.bf16.msra.mxu0 %v1622
        %1637 = vmatmul.bf16.gmra.mxu0 %v1627
        %v1638 = vpop.f32.mrf.mxu0
        %v1639 = vadd.f32 %v1612, %v1638
        %v1640 = vpop.f32.mrf.mxu0
        %1641 = vdwg.mxu0
        %v1642 = vpack.c.bf16 %v1639, %v1639
        %v1643 = vld [vmem:[%s1148] sm:$0xf]
        %v1644 = vld [vmem:[%s1148 + $0x4] sm:$0xf]
        %v1645 = vld [vmem:[%s1148 + $0x8] sm:$0xf]
        %v1646 = vld [vmem:[%s1148 + $0xc] sm:$0xf]
        %v1647 = vld [vmem:[%s1153] sm:$0xf]
        %v1648 = vld [vmem:[%s1153 + $0x4] sm:$0xf]
        %v1651 = vunpack.c.l.b16 %v1647
        %v1652 = vunpack.c.l.b16 %v1648
        %v1653 = vpack.c.b16 %v1652, %v1651
        %v1656 = vsel %vm1601, %v1210, 0
        %1658 = vmatpush.bf16.msra.mxu0 0
        %1659 = vmatpush.bf16.msra.mxu0 0
        %1660 = vmatpush.bf16.msra.mxu0 0
        %1661 = vmatpush.bf16.msra.mxu0 0
        %1662 = vmatpush.bf16.msra.mxu0 0
        %1663 = vmatpush.bf16.msra.mxu0 0
        %1664 = vmatpush.bf16.msra.mxu0 0
        %1665 = vmatpush.bf16.msra.mxu0 %v1653
        %1666 = vmatmul.bf16.gmra.mxu0 %v1656
        %v1667 = vpop.f32.mrf.mxu0
        %v1668 = vadd.f32 0.0, %v1667
        %v1669 = vpop.f32.mrf.mxu0
        %1670 = vdwg.mxu0
        %v1675 = vunpack.c.l.b16 %v1643
        %v1676 = vunpack.c.l.b16 %v1644
        %v1677 = vunpack.c.l.b16 %v1645
        %v1678 = vunpack.c.l.b16 %v1646
        %v1679 = vpack.c.b16 %v1676, %v1675
        %v1680 = vpack.c.b16 %v1678, %v1677
        %v1684 = vsel %vm1213, %v1642, 0
        %1686 = vmatpush.bf16.msra.mxu0 0
        %1687 = vmatpush.bf16.msra.mxu0 0
        %1688 = vmatpush.bf16.msra.mxu0 0
        %1689 = vmatpush.bf16.msra.mxu0 0
        %1690 = vmatpush.bf16.msra.mxu0 0
        %1691 = vmatpush.bf16.msra.mxu0 0
        %1692 = vmatpush.bf16.msra.mxu0 %v1680
        %1693 = vmatpush.bf16.msra.mxu0 %v1679
        %1694 = vmatmul.bf16.gmra.mxu0 %v1684
        %v1695 = vpop.f32.mrf.mxu0
        %v1696 = vadd.f32 %v1668, %v1695
        %v1697 = vpop.f32.mrf.mxu0
        %1698 = vdwg.mxu0
        %v1699 = vld [vmem:[%s1156] sm:$0x1]
        %v1701 = vperm.slane %v1699, 0
        %v1703 = vadd.f32 %v1696, %v1701
        %v1704 = vmax.f32 %v1703, 0.0
        %v1705 = vpack.c.bf16 %v1704, %v1704
        %v1706 = vld [vmem:[%s1160] sm:$0xf]
        %v1707 = vld [vmem:[%s1163] sm:$0x1]
        %v1709 = vperm.slane %v1707, 0
        %v1712 = vsel %vm1354, %v1705, 0
        %v1715 = vsel %vm1504, %v1706, 0
        %1717 = vmatpush.bf16.msra.mxu0 0
        %1718 = vmatpush.bf16.msra.mxu0 0
        %1719 = vmatpush.bf16.msra.mxu0 0
        %1720 = vmatpush.bf16.msra.mxu0 0
        %1721 = vmatpush.bf16.msra.mxu0 0
        %1722 = vmatpush.bf16.msra.mxu0 0
        %1723 = vmatpush.bf16.msra.mxu0 0
        %1724 = vmatpush.bf16.msra.mxu0 %v1715
        %1725 = vmatmul.bf16.gmra.mxu0 %v1712
        %v1726 = vpop.f32.mrf.mxu0
        %v1727 = vadd.f32 %v1709, %v1726
        %v1728 = vpop.f32.mrf.mxu0
        %1729 = vdwg.mxu0
        %v1730 = vadd.f32 %v1639, %v1727
        %v1731 = vadd.f32 %v1250, %v1730
        %v1732 = vpack.c.bf16 %v1731, %v1731
        %v1733 = vld [vmem:[%s1168] sm:$0xf]
        %v1734 = vld [vmem:[%s1168 + $0x4] sm:$0xf]
        %v1735 = vld [vmem:[%s1168 + $0x8] sm:$0xf]
        %v1736 = vld [vmem:[%s1168 + $0xc] sm:$0xf]
        %v1737 = vld [vmem:[%s1171] sm:$0x1]
        %v1739 = vperm.slane %v1737, 0
        %v1745 = vunpack.c.l.b16 %v1733
        %v1746 = vunpack.c.l.b16 %v1734
        %v1747 = vunpack.c.l.b16 %v1735
        %v1748 = vunpack.c.l.b16 %v1736
        %v1749 = vpack.c.b16 %v1746, %v1745
        %v1750 = vpack.c.b16 %v1748, %v1747
        %v1754 = vsel %vm1213, %v1732, 0
        %1756 = vmatpush.bf16.msra.mxu0 0
        %1757 = vmatpush.bf16.msra.mxu0 0
        %1758 = vmatpush.bf16.msra.mxu0 0
        %1759 = vmatpush.bf16.msra.mxu0 0
        %1760 = vmatpush.bf16.msra.mxu0 0
        %1761 = vmatpush.bf16.msra.mxu0 0
        %1762 = vmatpush.bf16.msra.mxu0 %v1750
        %1763 = vmatpush.bf16.msra.mxu0 %v1749
        %1764 = vmatmul.bf16.gmra.mxu0 %v1754
        %v1765 = vpop.f32.mrf.mxu0
        %v1766 = vadd.f32 %v1739, %v1765
        %v1767 = vpop.f32.mrf.mxu0
        %1768 = vdwg.mxu0
        %v1769 = vmax.f32 %v1766, 0.0
        %v1770 = vpack.c.bf16 %v1769, %v1769
        %v1771 = vld [vmem:[%s1176] sm:$0xf]
        %v1772 = vld [vmem:[%s1176 + $0x4] sm:$0xf]
        %v1773 = vld [vmem:[%s1176 + $0x8] sm:$0xf]
        %v1774 = vld [vmem:[%s1176 + $0xc] sm:$0xf]
        %v1775 = vld [vmem:[%s1176 + $0x10] sm:$0xf]
        %v1776 = vld [vmem:[%s1176 + $0x14] sm:$0xf]
        %v1777 = vld [vmem:[%s1176 + $0x18] sm:$0xf]
        %v1778 = vld [vmem:[%s1176 + $0x1c] sm:$0xf]
        %v1779 = vld [vmem:[%s1179] sm:$0x1]
        %v1781 = vperm.slane %v1779, 0
        %v1791 = vunpack.c.l.b16 %v1771
        %v1792 = vunpack.c.l.b16 %v1772
        %v1793 = vunpack.c.l.b16 %v1773
        %v1794 = vunpack.c.l.b16 %v1774
        %v1795 = vunpack.c.l.b16 %v1775
        %v1796 = vunpack.c.l.b16 %v1776
        %v1797 = vunpack.c.l.b16 %v1777
        %v1798 = vunpack.c.l.b16 %v1778
        %v1799 = vpack.c.b16 %v1792, %v1791
        %v1800 = vpack.c.b16 %v1794, %v1793
        %v1801 = vpack.c.b16 %v1796, %v1795
        %v1802 = vpack.c.b16 %v1798, %v1797
        %vm1807 = vcmask 523264
        %v1809 = vsel %vm1807, %v1770, 0
        %1811 = vmatpush.bf16.msra.mxu0 0
        %1812 = vmatpush.bf16.msra.mxu0 0
        %1813 = vmatpush.bf16.msra.mxu0 0
        %1814 = vmatpush.bf16.msra.mxu0 0
        %1815 = vmatpush.bf16.msra.mxu0 %v1802
        %1816 = vmatpush.bf16.msra.mxu0 %v1801
        %1817 = vmatpush.bf16.msra.mxu0 %v1800
        %1818 = vmatpush.bf16.msra.mxu0 %v1799
        %1819 = vmatmul.bf16.gmra.mxu0 %v1809
        %v1820 = vpop.f32.mrf.mxu0
        %v1821 = vadd.f32 %v1781, %v1820
        %v1822 = vpop.f32.mrf.mxu0
        %1823 = vdwg.mxu0
        %v1824 = vpack.c.bf16 %v1821, %v1821
        %v1825 = vld [vmem:[%s1184] sm:$0xf]
        %v1826 = vld [vmem:[%s1184 + $0x4] sm:$0xf]
        %v1827 = vld [vmem:[%s1184 + $0x8] sm:$0xf]
        %v1828 = vld [vmem:[%s1184 + $0xc] sm:$0xf]
        %v1829 = vld [vmem:[%s1189] sm:$0xf]
        %v1830 = vld [vmem:[%s1189 + $0x4] sm:$0xf]
        %v1833 = vunpack.c.l.b16 %v1829
        %v1834 = vunpack.c.l.b16 %v1830
        %v1835 = vpack.c.b16 %v1834, %v1833
        %1837 = vmatpush.bf16.msra.mxu0 0
        %1838 = vmatpush.bf16.msra.mxu0 0
        %1839 = vmatpush.bf16.msra.mxu0 0
        %1840 = vmatpush.bf16.msra.mxu0 0
        %1841 = vmatpush.bf16.msra.mxu0 0
        %1842 = vmatpush.bf16.msra.mxu0 0
        %1843 = vmatpush.bf16.msra.mxu0 0
        %1844 = vmatpush.bf16.msra.mxu0 %v1835
        %1845 = vmatmul.bf16.gmra.mxu0 %v1656
        %v1846 = vpop.f32.mrf.mxu0
        %v1847 = vadd.f32 0.0, %v1846
        %v1848 = vpop.f32.mrf.mxu0
        %1849 = vdwg.mxu0
        %v1854 = vunpack.c.l.b16 %v1825
        %v1855 = vunpack.c.l.b16 %v1826
        %v1856 = vunpack.c.l.b16 %v1827
        %v1857 = vunpack.c.l.b16 %v1828
        %v1858 = vpack.c.b16 %v1855, %v1854
        %v1859 = vpack.c.b16 %v1857, %v1856
        %v1863 = vsel %vm1213, %v1824, 0
        %1865 = vmatpush.bf16.msra.mxu0 0
        %1866 = vmatpush.bf16.msra.mxu0 0
        %1867 = vmatpush.bf16.msra.mxu0 0
        %1868 = vmatpush.bf16.msra.mxu0 0
        %1869 = vmatpush.bf16.msra.mxu0 0
        %1870 = vmatpush.bf16.msra.mxu0 0
        %1871 = vmatpush.bf16.msra.mxu0 %v1859
        %1872 = vmatpush.bf16.msra.mxu0 %v1858
        %1873 = vmatmul.bf16.gmra.mxu0 %v1863
        %v1874 = vpop.f32.mrf.mxu0
        %v1875 = vadd.f32 %v1847, %v1874
        %v1876 = vpop.f32.mrf.mxu0
        %1877 = vdwg.mxu0
        %v1878 = vld [vmem:[%s1192] sm:$0x1]
        %v1880 = vperm.slane %v1878, 0
        %v1882 = vadd.f32 %v1875, %v1880
        %v1883 = vmax.f32 %v1882, 0.0
        %v1884 = vpack.c.bf16 %v1883, %v1883
        %v1885 = vld [vmem:[%s1196] sm:$0xf]
        %v1886 = vld [vmem:[%s1199] sm:$0x1]
        %v1888 = vperm.slane %v1886, 0
        %v1891 = vsel %vm1354, %v1884, 0
        %v1894 = vsel %vm1504, %v1885, 0
        %1896 = vmatpush.bf16.msra.mxu0 0
        %1897 = vmatpush.bf16.msra.mxu0 0
        %1898 = vmatpush.bf16.msra.mxu0 0
        %1899 = vmatpush.bf16.msra.mxu0 0
        %1900 = vmatpush.bf16.msra.mxu0 0
        %1901 = vmatpush.bf16.msra.mxu0 0
        %1902 = vmatpush.bf16.msra.mxu0 0
        %1903 = vmatpush.bf16.msra.mxu0 %v1894
        %1904 = vmatmul.bf16.gmra.mxu0 %v1891
        %v1905 = vpop.f32.mrf.mxu0
        %v1906 = vadd.f32 %v1888, %v1905
        %v1907 = vpop.f32.mrf.mxu0
        %1908 = vdwg.mxu0
        %v1909 = vadd.f32 %v1821, %v1906
        %v1910 = vadd.f32 %v1731, %v1909
        %1911 = vst.msk [vmem:[#allocation2] sm:$0xff] %vm1213, %v1910
        %1912 = vrot.lane.b32.xlu0 %v1345, 96
        %v1913 = vpop.permute.xlu0 %1912
        %vm1915 = vcmask 257024
        %1916 = vst.msk [vmem:[%s1100] sm:$0xf] %vm1915, %v1913
        %1917 = vrot.lane.b32.xlu0 %v1345, 64
        %v1918 = vpop.permute.xlu0 %1917
        %1920 = vst.msk [vmem:[%s1107] sm:$0xf] %vm1915, %v1918
        %p1921 = scmp.eq.s32.totalorder %s49, 1
        // Predicated region
        $region121: #{tpu_custom_call.1} parent=115 // pred_check
          %p1922 = pneg %p1921
        $region122: #{tpu_custom_call.1} parent=115 // pred_check_branch
          %1924 = sbr.rel (%p1922) target = $region124
        $region123: #{tpu_custom_call.1} parent=115 // pred_region
          %v1925 = vld [vmem:[#allocation2] sm:$0xff]
          %1926 = vst.msk [vmem:[%s1093] sm:$0xff] %vm1213, %v1925
        $region124: #{tpu_custom_call.1} parent=115 // pred_fallthru
          _
        %s1927 = sand.u32 %s688, 1
        %s1928 = scalar_lea.sflag [#allocation4], %s1927
        %s1929 = sand.u32 %s688, 1
        %s1930 = smul.addr %s1929, 8
        %s1931 = scalar_lea.vmem [#allocation3], %s1930
        %s1932 = sand.u32 %s44, 1
        %s1933 = scalar_lea.sflag [#allocation6], %s1932
        %s1934 = sand.u32 %s716, 1
        %s1935 = smul.addr %s1934, 4
        %s1936 = scalar_lea.vmem [#allocation5], %s1935
        %s1937 = sand.u32 %s44, 1
        %s1938 = scalar_lea.sflag [#allocation6], %s1937
        %s1939 = sand.u32 %s744, 1
        %s1940 = smul.addr %s1939, 4
        %s1941 = scalar_lea.vmem [#allocation7], %s1940
        // Predicated region
        $region125: #{tpu_custom_call.1} parent=115 // pred_check
          %p1942 = pneg %p698
        $region126: #{tpu_custom_call.1} parent=115 // pred_check_branch
          %1944 = sbr.rel (%p1942) target = $region128
        $region127: #{tpu_custom_call.1} parent=115 // pred_region
          %1946 = vsyncadd %s1928, 0
          %s1947 = smul.addr %s48, 8
          %s1948 = scalar_lea.hbm %s24, %s1947
          %s1950 = sshll.u32 %s1931, 4
          %s1951 = int_to_ptr.vmem [resolvable:$true] %s1950
          %s1952 = sshll.u32 %s1948, 4
          %s1953 = int_to_ptr.hbm [resolvable:$true] %s1952
          %1955 = dma.vmem_to_hbm [thread:$0]  %s1951, 128, %s1953, %s1928
        $region128: #{tpu_custom_call.1} parent=115 // pred_fallthru
          _
        // Predicated region
        $region129: #{tpu_custom_call.1} parent=115 // pred_check
          %p1956 = pneg %p726
        $region130: #{tpu_custom_call.1} parent=115 // pred_check_branch
          %1958 = sbr.rel (%p1956) target = $region132
        $region131: #{tpu_custom_call.1} parent=115 // pred_region
          %1960 = vsyncadd %s1933, 0
          %s1961 = smul.addr %s49, 2
          %s1962 = sadd.s32 %s48, %s1961
          %s1963 = smul.addr %s1962, 4
          %s1964 = scalar_lea.hbm %s25, %s1963
          %s1966 = sshll.u32 %s1936, 4
          %s1967 = int_to_ptr.vmem [resolvable:$true] %s1966
          %s1968 = sshll.u32 %s1964, 4
          %s1969 = int_to_ptr.hbm [resolvable:$true] %s1968
          %1971 = dma.vmem_to_hbm [thread:$0]  %s1967, 64, %s1969, %s1933
        $region132: #{tpu_custom_call.1} parent=115 // pred_fallthru
          _
        // Predicated region
        $region133: #{tpu_custom_call.1} parent=115 // pred_check
          %p1972 = pneg %p754
        $region134: #{tpu_custom_call.1} parent=115 // pred_check_branch
          %1974 = sbr.rel (%p1972) target = $region136
        $region135: #{tpu_custom_call.1} parent=115 // pred_region
          %1976 = vsyncadd %s1938, 0
          %s1977 = smul.addr %s49, 2
          %s1978 = sadd.s32 %s48, %s1977
          %s1979 = smul.addr %s1978, 4
          %s1980 = scalar_lea.hbm %s26, %s1979
          %s1982 = sshll.u32 %s1941, 4
          %s1983 = int_to_ptr.vmem [resolvable:$true] %s1982
          %s1984 = sshll.u32 %s1980, 4
          %s1985 = int_to_ptr.hbm [resolvable:$true] %s1984
          %1987 = dma.vmem_to_hbm [thread:$0]  %s1983, 64, %s1985, %s1938
        $region136: #{tpu_custom_call.1} parent=115 // pred_fallthru
          _
      $region116: #{tpu_custom_call.1} parent=5 // pred_fallthru
        _
      %p1988 = scmp.le.s32.totalorder 2, %s39
      // Predicated region
      $region137: #{tpu_custom_call.1} parent=5 // pred_check
        %p1989 = pneg %p1988
      $region138: #{tpu_custom_call.1} parent=5 // pred_check_branch
        %1991 = sbr.rel (%p1989) target = $region140
      $region139: #{tpu_custom_call.1} parent=5 // pred_region
        %s1992 = ssub.s32 %s39, 2
        // Predicated region
        $region141: #{tpu_custom_call.1} parent=139 // pred_check
          %p1993 = pneg %p704
        $region142: #{tpu_custom_call.1} parent=139 // pred_check_branch
          %1995 = sbr.rel (%p1993) target = $region144
        $region143: #{tpu_custom_call.1} parent=139 // pred_region
          %s1996 = sand.u32 %s689, 1
          %s1997 = scalar_lea.sflag [#allocation4], %s1996
          %s1998 = sand.u32 %s689, 1
          %s1999 = smul.addr %s1998, 8
          %s2000 = scalar_lea.vmem [#allocation3], %s1999
          %2002 = dma.done %s1997, 128
        $region144: #{tpu_custom_call.1} parent=139 // pred_fallthru
          _
        // Predicated region
        $region145: #{tpu_custom_call.1} parent=139 // pred_check
          %p2003 = pneg %p732
        $region146: #{tpu_custom_call.1} parent=139 // pred_check_branch
          %2005 = sbr.rel (%p2003) target = $region148
        $region147: #{tpu_custom_call.1} parent=139 // pred_region
          %s2006 = sand.u32 %s45, 1
          %s2007 = scalar_lea.sflag [#allocation6], %s2006
          %s2008 = sand.u32 %s717, 1
          %s2009 = smul.addr %s2008, 4
          %s2010 = scalar_lea.vmem [#allocation5], %s2009
          %2012 = dma.done %s2007, 64
        $region148: #{tpu_custom_call.1} parent=139 // pred_fallthru
          _
        // Predicated region
        $region149: #{tpu_custom_call.1} parent=139 // pred_check
          %p2013 = pneg %p760
        $region150: #{tpu_custom_call.1} parent=139 // pred_check_branch
          %2015 = sbr.rel (%p2013) target = $region152
        $region151: #{tpu_custom_call.1} parent=139 // pred_region
          %s2016 = sand.u32 %s45, 1
          %s2017 = scalar_lea.sflag [#allocation6], %s2016
          %s2018 = sand.u32 %s745, 1
          %s2019 = smul.addr %s2018, 4
          %s2020 = scalar_lea.vmem [#allocation7], %s2019
          %2022 = dma.done %s2017, 64
        $region152: #{tpu_custom_call.1} parent=139 // pred_fallthru
          _
      $region140: #{tpu_custom_call.1} parent=5 // pred_fallthru
        _
    $region6: #{tpu_custom_call.1} parent=1 // loop_footer
      %s43 = sadd.s32 1, %s39
    $region7: #{tpu_custom_call.1} parent=1 // loop_footer_branch
      %38 = sbr.rel target = $region3
    $region8: #{tpu_custom_call.1} parent=1 // loop_exit
      _
    %2023 = vsyncpa [#allocation4], 1
    %s2024 = scalar_lea.sflag [#allocation4], 1
    %2025 = vsyncpa %s2024, 1
    %2026 = vsyncpa [#allocation6], 1
    %s2027 = scalar_lea.sflag [#allocation6], 1
    %2028 = vsyncpa %s2027, 1

</llo_original>
